<compile_context>
chip_gen: v6e
topology: v6e:2x2x1
jax: 0.10.0
libtpu: 0.0.40
codegen_flags: <defaults>
</compile_context>

<pallas_src>
import math

import jax
import jax.numpy as jnp
from jax.experimental import pallas as pl
from jax.experimental.pallas import tpu as pltpu

# ---- model hyper-parameters (small, TPU-layout friendly) ----
N_EMBD = 128        # C
N_HEAD = 4
HEAD_DIM = N_EMBD // N_HEAD
BLOCK_SIZE = 16     # T (== block_size, causal mask size)
BATCH = 2           # B
LN_EPS = 1e-5
NEG_BIG = -1e30     # finite additive causal mask (robust vs -inf)


def _layernorm_f32(x, w):
    # PyTorch nn.LayerNorm(bias=False): (x - mean)/sqrt(var + eps) * weight
    mu = jnp.mean(x, axis=-1, keepdims=True)
    xc = x - mu
    var = jnp.mean(xc * xc, axis=-1, keepdims=True)
    return xc * jax.lax.rsqrt(var + LN_EPS) * w


def block_kernel(x_ref, ln1w_ref, wqkv_ref, wproj_ref, ln2w_ref,
                 w1_ref, b1_ref, w2_ref, b2_ref, out_ref):
    """Single grid step: whole (B*T, C) slab + all weights resident in VMEM."""
    B, T, C, H, hd = BATCH, BLOCK_SIZE, N_EMBD, N_HEAD, HEAD_DIM
    BT = B * T

    x = x_ref[...].astype(jnp.float32)                               # (BT, C)

    # ---------------- attention branch ----------------
    h1 = _layernorm_f32(x, ln1w_ref[...])                            # (BT, C)
    # NOTE: 1/sqrt(hd) is folded into the q columns of W_qkv offline.
    qkv = jnp.dot(h1.astype(jnp.bfloat16), wqkv_ref[...],
                  preferred_element_type=jnp.float32)                # (BT, 3C)

    # One lane-dense bf16 cast per tensor (full 128-lane slices).
    q = qkv[:, 0 * C:1 * C].astype(jnp.bfloat16)
    k = qkv[:, 1 * C:2 * C].astype(jnp.bfloat16)
    v = qkv[:, 2 * C:3 * C].astype(jnp.bfloat16)

    def split_heads(t):
        # (BT, C) -> (H*B, T, hd); head-major along the new batch dim.
        t3 = t.reshape(B, T, C)                                      # leading split
        return jnp.concatenate(
            [t3[:, :, h * hd:(h + 1) * hd] for h in range(H)], axis=0)

    qh, kh, vh = split_heads(q), split_heads(k), split_heads(v)      # (H*B, T, hd)

    # Additive causal bias, computed once, shared by all (head, batch) pairs.
    row = jax.lax.broadcasted_iota(jnp.int32, (T, T), 0)
    col = jax.lax.broadcasted_iota(jnp.int32, (T, T), 1)
    bias = jnp.where(row >= col, 0.0, NEG_BIG).astype(jnp.float32)   # (T, T)

    # Batched scores / context over the merged (H*B)=8 batch dim.
    att = jnp.einsum('bqd,bkd->bqk', qh, kh,
                     preferred_element_type=jnp.float32) + bias[None]

    # Softmax (f32); reciprocal rides the EUP slot.
    m = jnp.max(att, axis=-1, keepdims=True)
    e = jnp.exp(att - m)
    p = e * pl.reciprocal(jnp.sum(e, axis=-1, keepdims=True), approx=True)
    # TODO(synk): attn_dropout / resid_dropout skipped (p=0 / eval mode -> identity)

    ctx = jnp.einsum('bqk,bkd->bqd', p.astype(jnp.bfloat16), vh,
                     preferred_element_type=jnp.float32)             # (H*B, T, hd)

    # Merge heads back to a lane-dense (BT, C) slab, then ONE full-K projection.
    y = jnp.concatenate([ctx[h * B:(h + 1) * B] for h in range(H)],
                        axis=-1).reshape(BT, C)                      # (BT, C) f32
    attn_out = jnp.dot(y.astype(jnp.bfloat16), wproj_ref[...],
                       preferred_element_type=jnp.float32)           # (BT, C)

    x1 = x + attn_out                                                # residual 1

    # ---------------- feed-forward branch ----------------
    h2 = _layernorm_f32(x1, ln2w_ref[...])                           # (BT, C)
    f = jnp.dot(h2.astype(jnp.bfloat16), w1_ref[...],
                preferred_element_type=jnp.float32) + b1_ref[...]    # (BT, 4C)
    f = jnp.maximum(f, 0.0)                                          # ReLU (f32)
    f = jnp.dot(f.astype(jnp.bfloat16), w2_ref[...],
                preferred_element_type=jnp.float32) + b2_ref[...]    # (BT, C)

    out_ref[...] = (x1 + f).astype(out_ref.dtype)                    # residual 2


@jax.jit
def transformer_block(x, ln1_w, w_qkv, w_proj, ln2_w, w1, b1, w2, b2):
    """x: (B, T, C) f32. Matmul weights must already be bf16 (prepped at init)."""
    B, T, C = x.shape
    BT = B * T
    x2 = x.reshape(BT, C)      # free row-major reshape: batch folded into matmul M

    full = lambda i: (0, 0)
    out2 = pl.pallas_call(
        block_kernel,
        out_shape=jax.ShapeDtypeStruct((BT, C), x.dtype),
        grid_spec=pltpu.PrefetchScalarGridSpec(
            num_scalar_prefetch=0,
            grid=(1,),                          # single step: pipeline overhead paid once
            in_specs=[
                pl.BlockSpec((BT, C), lambda i: (0, 0)),      # x (flattened)
                pl.BlockSpec((1, C), full),                   # ln1 weight (f32)
                pl.BlockSpec((C, 3 * C), full),               # W_qkv (bf16, q cols pre-scaled)
                pl.BlockSpec((C, C), full),                   # W_proj (bf16)
                pl.BlockSpec((1, C), full),                   # ln2 weight (f32)
                pl.BlockSpec((C, 4 * C), full),               # ffwd W1 (bf16)
                pl.BlockSpec((1, 4 * C), full),               # ffwd b1 (f32)
                pl.BlockSpec((4 * C, C), full),               # ffwd W2 (bf16)
                pl.BlockSpec((1, C), full),                   # ffwd b2 (f32)
            ],
            out_specs=pl.BlockSpec((BT, C), lambda i: (0, 0)),
        ),
        compiler_params=pltpu.CompilerParams(
            dimension_semantics=("arbitrary",)),
    )(x2, ln1_w, w_qkv, w_proj, ln2_w, w1, b1, w2, b2)
    return out2.reshape(B, T, C)


# ------------------- pure-JAX reference for verification -------------------
def block_ref(x, ln1_w, w_qkv, w_proj, ln2_w, w1, b1, w2, b2):
    B, T, C = x.shape
    f32 = jnp.float32
    w_qkv, w_proj, w1, w2 = (a.astype(f32) for a in (w_qkv, w_proj, w1, w2))

    def ln(v, w):
        mu = v.mean(-1, keepdims=True)
        var = ((v - mu) ** 2).mean(-1, keepdims=True)
        return (v - mu) / jnp.sqrt(var + LN_EPS) * w

    h = ln(x, ln1_w[0])
    qkv = h @ w_qkv
    q, k, v = jnp.split(qkv, 3, axis=-1)
    reshp = lambda t: t.reshape(B, T, N_HEAD, HEAD_DIM).transpose(0, 2, 1, 3)
    q, k, v = reshp(q), reshp(k), reshp(v)
    att = jnp.einsum("bhtd,bhsd->bhts", q, k) / math.sqrt(HEAD_DIM)
    mask = jnp.tril(jnp.ones((T, T), bool))
    att = jnp.where(mask[None, None], att, -jnp.inf)
    att = jax.nn.softmax(att, axis=-1)
    y = jnp.einsum("bhts,bhsd->bhtd", att, v)
    y = y.transpose(0, 2, 1, 3).reshape(B, T, C)
    x = x + y @ w_proj
    h2 = ln(x, ln2_w[0])
    f = jnp.maximum(h2 @ w1 + b1, 0.0) @ w2 + b2
    return x + f


if __name__ == "__main__":
    C = N_EMBD
    key = jax.random.PRNGKey(0)
    kx, k0, k1, k2, k3, k4, k5, k6, k7 = jax.random.split(key, 9)

    x = jax.random.normal(kx, (BATCH, BLOCK_SIZE, C), jnp.float32)

    # Deterministic synthetic parameters (PyTorch-like, transposed to (in, out)).
    # Matmul weights are quantized to bf16 ONCE here (init time, outside jit).
    ln1_w = 1.0 + 0.1 * jax.random.normal(k0, (1, C), jnp.float32)
    w_qkv = (0.02 * jax.random.normal(k1, (C, 3 * C), jnp.float32)).astype(jnp.bfloat16)
    w_proj = (0.02 * jax.random.normal(k2, (C, C), jnp.float32)).astype(jnp.bfloat16)
    ln2_w = 1.0 + 0.1 * jax.random.normal(k3, (1, C), jnp.float32)
    w1 = (0.02 * jax.random.normal(k4, (C, 4 * C), jnp.float32)).astype(jnp.bfloat16)
    b1 = 0.01 * jax.random.normal(k5, (1, 4 * C), jnp.float32)
    w2 = (0.02 * jax.random.normal(k6, (4 * C, C), jnp.float32)).astype(jnp.bfloat16)
    b2 = 0.01 * jax.random.normal(k7, (1, C), jnp.float32)

    # Offline weight prep for the kernel (executed eagerly, once):
    # fold 1/sqrt(head_dim) into the q columns of W_qkv, keep bf16 storage.
    scale = 1.0 / math.sqrt(HEAD_DIM)
    w_qkv_f32 = w_qkv.astype(jnp.float32)
    w_qkv_kern = jnp.concatenate(
        [w_qkv_f32[:, :C] * scale, w_qkv_f32[:, C:]], axis=1).astype(jnp.bfloat16)

    out = transformer_block(x, ln1_w, w_qkv_kern, w_proj, ln2_w, w1, b1, w2, b2)
    out = jax.block_until_ready(out)

    ref = block_ref(x, ln1_w, w_qkv, w_proj, ln2_w, w1, b1, w2, b2)
    assert out.shape == ref.shape and out.dtype == ref.dtype
    # bf16 MXU operands + approx-reciprocal softmax vs f32 reference -> relaxed
    # tolerance (intentional, inference-grade numerics).
    assert jnp.allclose(out, ref, rtol=2e-2, atol=2e-2), "mismatch vs reference"

    print("KERNEL_OK")
</pallas_src>

<mosaic_0001>
module attributes {stable_mosaic.version = 11 : i64} {
  func.func @block_kernel(%arg0: i32, %arg1: memref<32x128xf32, #tpu.memory_space<vmem>>, %arg2: memref<1x128xf32, #tpu.memory_space<vmem>>, %arg3: memref<128x384xbf16, #tpu.memory_space<vmem>>, %arg4: memref<128x128xbf16, #tpu.memory_space<vmem>>, %arg5: memref<1x128xf32, #tpu.memory_space<vmem>>, %arg6: memref<128x512xbf16, #tpu.memory_space<vmem>>, %arg7: memref<1x512xf32, #tpu.memory_space<vmem>>, %arg8: memref<512x128xbf16, #tpu.memory_space<vmem>>, %arg9: memref<1x128xf32, #tpu.memory_space<vmem>>, %arg10: memref<32x128xf32, #tpu.memory_space<vmem>>) attributes {dimension_semantics = [#tpu.dimension_semantics<arbitrary>], iteration_bounds = array<i64: 1>, scalar_prefetch = 0 : i64, scratch_operands = 0 : i64, tpu.core_type = #tpu.core_type<tc>, window_params = [{pipeline_mode = #tpu.pipeline_mode<synchronous>, transform_indices = @transform_0, window_bounds = array<i64: 32, 128>}, {pipeline_mode = #tpu.pipeline_mode<synchronous>, transform_indices = @transform_1, window_bounds = array<i64: 1, 128>}, {pipeline_mode = #tpu.pipeline_mode<synchronous>, transform_indices = @transform_2, window_bounds = array<i64: 128, 384>}, {pipeline_mode = #tpu.pipeline_mode<synchronous>, transform_indices = @transform_3, window_bounds = array<i64: 128, 128>}, {pipeline_mode = #tpu.pipeline_mode<synchronous>, transform_indices = @transform_4, window_bounds = array<i64: 1, 128>}, {pipeline_mode = #tpu.pipeline_mode<synchronous>, transform_indices = @transform_5, window_bounds = array<i64: 128, 512>}, {pipeline_mode = #tpu.pipeline_mode<synchronous>, transform_indices = @transform_6, window_bounds = array<i64: 1, 512>}, {pipeline_mode = #tpu.pipeline_mode<synchronous>, transform_indices = @transform_7, window_bounds = array<i64: 512, 128>}, {pipeline_mode = #tpu.pipeline_mode<synchronous>, transform_indices = @transform_8, window_bounds = array<i64: 1, 128>}, {pipeline_mode = #tpu.pipeline_mode<synchronous>, transform_indices = @transform_9, window_bounds = array<i64: 32, 128>}]} {
    %c0 = arith.constant 0 : index
    %c0_0 = arith.constant 0 : index
    %0 = vector.load %arg1[%c0, %c0_0] : memref<32x128xf32, #tpu.memory_space<vmem>>, vector<32x128xf32>
    %c0_1 = arith.constant 0 : index
    %c0_2 = arith.constant 0 : index
    %1 = vector.load %arg2[%c0_1, %c0_2] : memref<1x128xf32, #tpu.memory_space<vmem>>, vector<1x128xf32>
    %cst = arith.constant dense<0.000000e+00> : vector<32xf32>
    %2 = vector.multi_reduction <add>, %0, %cst [1] : vector<32x128xf32> to vector<32xf32>
    %3 = vector.shape_cast %2 : vector<32xf32> to vector<32x1xf32>
    %cst_3 = arith.constant 1.280000e+02 : f32
    %4 = vector.broadcast %cst_3 : f32 to vector<32x1xf32>
    %5 = arith.divf %3, %4 : vector<32x1xf32>
    %6 = vector.broadcast %5 : vector<32x1xf32> to vector<32x128xf32>
    %7 = arith.subf %0, %6 : vector<32x128xf32>
    %8 = arith.mulf %7, %7 : vector<32x128xf32>
    %cst_4 = arith.constant dense<0.000000e+00> : vector<32xf32>
    %9 = vector.multi_reduction <add>, %8, %cst_4 [1] : vector<32x128xf32> to vector<32xf32>
    %10 = vector.shape_cast %9 : vector<32xf32> to vector<32x1xf32>
    %cst_5 = arith.constant 1.280000e+02 : f32
    %11 = vector.broadcast %cst_5 : f32 to vector<32x1xf32>
    %12 = arith.divf %10, %11 : vector<32x1xf32>
    %cst_6 = arith.constant 9.99999974E-6 : f32
    %13 = vector.broadcast %cst_6 : f32 to vector<32x1xf32>
    %14 = arith.addf %12, %13 : vector<32x1xf32>
    %15 = math.rsqrt %14 : vector<32x1xf32>
    %16 = vector.broadcast %15 : vector<32x1xf32> to vector<32x128xf32>
    %17 = arith.mulf %7, %16 : vector<32x128xf32>
    %18 = vector.broadcast %1 : vector<1x128xf32> to vector<32x128xf32>
    %19 = arith.mulf %17, %18 : vector<32x128xf32>
    %20 = arith.truncf %19 : vector<32x128xf32> to vector<32x128xbf16>
    %c0_7 = arith.constant 0 : index
    %c0_8 = arith.constant 0 : index
    %21 = vector.load %arg3[%c0_7, %c0_8] : memref<128x384xbf16, #tpu.memory_space<vmem>>, vector<128x384xbf16>
    %cst_9 = arith.constant dense<0.000000e+00> : vector<32x384xf32>
    %22 = tpu.matmul %20, %21, %cst_9 {dimension_numbers = #tpu.dot_dimension_numbers<[1], [0], [0], [1], [0, 0, 1, 1], [], []>} : vector<32x128xbf16>, vector<128x384xbf16>, vector<32x384xf32> -> vector<32x384xf32>
    %23 = vector.extract_strided_slice %22 {offsets = [0, 0], sizes = [32, 128], strides = [1, 1]} : vector<32x384xf32> to vector<32x128xf32>
    %24 = arith.truncf %23 : vector<32x128xf32> to vector<32x128xbf16>
    %25 = vector.extract_strided_slice %22 {offsets = [0, 128], sizes = [32, 128], strides = [1, 1]} : vector<32x384xf32> to vector<32x128xf32>
    %26 = arith.truncf %25 : vector<32x128xf32> to vector<32x128xbf16>
    %27 = vector.extract_strided_slice %22 {offsets = [0, 256], sizes = [32, 128], strides = [1, 1]} : vector<32x384xf32> to vector<32x128xf32>
    %28 = arith.truncf %27 : vector<32x128xf32> to vector<32x128xbf16>
    %29 = vector.shape_cast %24 : vector<32x128xbf16> to vector<2x16x128xbf16>
    %30 = vector.extract_strided_slice %29 {offsets = [0, 0, 0], sizes = [2, 16, 32], strides = [1, 1, 1]} : vector<2x16x128xbf16> to vector<2x16x32xbf16>
    %31 = vector.extract_strided_slice %29 {offsets = [0, 0, 32], sizes = [2, 16, 32], strides = [1, 1, 1]} : vector<2x16x128xbf16> to vector<2x16x32xbf16>
    %32 = vector.extract_strided_slice %29 {offsets = [0, 0, 64], sizes = [2, 16, 32], strides = [1, 1, 1]} : vector<2x16x128xbf16> to vector<2x16x32xbf16>
    %33 = vector.extract_strided_slice %29 {offsets = [0, 0, 96], sizes = [2, 16, 32], strides = [1, 1, 1]} : vector<2x16x128xbf16> to vector<2x16x32xbf16>
    %34 = tpu.concatenate %30, %31, %32, %33 in 0 : vector<2x16x32xbf16>, vector<2x16x32xbf16>, vector<2x16x32xbf16>, vector<2x16x32xbf16> -> vector<8x16x32xbf16>
    %35 = vector.shape_cast %26 : vector<32x128xbf16> to vector<2x16x128xbf16>
    %36 = vector.extract_strided_slice %35 {offsets = [0, 0, 0], sizes = [2, 16, 32], strides = [1, 1, 1]} : vector<2x16x128xbf16> to vector<2x16x32xbf16>
    %37 = vector.extract_strided_slice %35 {offsets = [0, 0, 32], sizes = [2, 16, 32], strides = [1, 1, 1]} : vector<2x16x128xbf16> to vector<2x16x32xbf16>
    %38 = vector.extract_strided_slice %35 {offsets = [0, 0, 64], sizes = [2, 16, 32], strides = [1, 1, 1]} : vector<2x16x128xbf16> to vector<2x16x32xbf16>
    %39 = vector.extract_strided_slice %35 {offsets = [0, 0, 96], sizes = [2, 16, 32], strides = [1, 1, 1]} : vector<2x16x128xbf16> to vector<2x16x32xbf16>
    %40 = tpu.concatenate %36, %37, %38, %39 in 0 : vector<2x16x32xbf16>, vector<2x16x32xbf16>, vector<2x16x32xbf16>, vector<2x16x32xbf16> -> vector<8x16x32xbf16>
    %41 = vector.shape_cast %28 : vector<32x128xbf16> to vector<2x16x128xbf16>
    %42 = vector.extract_strided_slice %41 {offsets = [0, 0, 0], sizes = [2, 16, 32], strides = [1, 1, 1]} : vector<2x16x128xbf16> to vector<2x16x32xbf16>
    %43 = vector.extract_strided_slice %41 {offsets = [0, 0, 32], sizes = [2, 16, 32], strides = [1, 1, 1]} : vector<2x16x128xbf16> to vector<2x16x32xbf16>
    %44 = vector.extract_strided_slice %41 {offsets = [0, 0, 64], sizes = [2, 16, 32], strides = [1, 1, 1]} : vector<2x16x128xbf16> to vector<2x16x32xbf16>
    %45 = vector.extract_strided_slice %41 {offsets = [0, 0, 96], sizes = [2, 16, 32], strides = [1, 1, 1]} : vector<2x16x128xbf16> to vector<2x16x32xbf16>
    %46 = tpu.concatenate %42, %43, %44, %45 in 0 : vector<2x16x32xbf16>, vector<2x16x32xbf16>, vector<2x16x32xbf16>, vector<2x16x32xbf16> -> vector<8x16x32xbf16>
    %47 = tpu.iota {dimensions = array<i32: 0>} : vector<16x16xi32>
    %48 = tpu.iota {dimensions = array<i32: 1>} : vector<16x16xi32>
    %49 = arith.cmpi sge, %47, %48 : vector<16x16xi32>
    %cst_10 = arith.constant 0.000000e+00 : f32
    %cst_11 = arith.constant -1.000000e+30 : f32
    %50 = vector.broadcast %cst_10 : f32 to vector<16x16xf32>
    %51 = vector.broadcast %cst_11 : f32 to vector<16x16xf32>
    %52 = arith.select %49, %50, %51 : vector<16x16xi1>, vector<16x16xf32>
    "tpu.trace_start"() <{level = 10 : i32, message = "bqd,bkd->bqk"}> : () -> ()
    %cst_12 = arith.constant dense<0.000000e+00> : vector<8x16x16xf32>
    %53 = tpu.matmul %34, %40, %cst_12 {dimension_numbers = #tpu.dot_dimension_numbers<[2], [2], [1], [1], [0, 0, 0, 1, 1, 1], [0], [0]>} : vector<8x16x32xbf16>, vector<8x16x32xbf16>, vector<8x16x16xf32> -> vector<8x16x16xf32>
    "tpu.trace_stop"() : () -> ()
    %54 = vector.shape_cast %52 : vector<16x16xf32> to vector<1x16x16xf32>
    %55 = vector.broadcast %54 : vector<1x16x16xf32> to vector<8x16x16xf32>
    %56 = arith.addf %53, %55 : vector<8x16x16xf32>
    %cst_13 = arith.constant dense<0xFF800000> : vector<8x16xf32>
    %57 = vector.multi_reduction <maximumf>, %56, %cst_13 [2] : vector<8x16x16xf32> to vector<8x16xf32>
    %58 = vector.shape_cast %57 : vector<8x16xf32> to vector<8x16x1xf32>
    %59 = vector.broadcast %58 : vector<8x16x1xf32> to vector<8x16x16xf32>
    %60 = arith.subf %56, %59 : vector<8x16x16xf32>
    %61 = math.exp %60 : vector<8x16x16xf32>
    %cst_14 = arith.constant dense<0.000000e+00> : vector<8x16xf32>
    %62 = vector.multi_reduction <add>, %61, %cst_14 [2] : vector<8x16x16xf32> to vector<8x16xf32>
    %63 = vector.shape_cast %62 : vector<8x16xf32> to vector<8x16x1xf32>
    %64 = tpu.reciprocal %63 {approx = true} : vector<8x16x1xf32> -> vector<8x16x1xf32>
    %65 = vector.broadcast %64 : vector<8x16x1xf32> to vector<8x16x16xf32>
    %66 = arith.mulf %61, %65 : vector<8x16x16xf32>
    %67 = arith.truncf %66 : vector<8x16x16xf32> to vector<8x16x16xbf16>
    "tpu.trace_start"() <{level = 10 : i32, message = "bqk,bkd->bqd"}> : () -> ()
    %cst_15 = arith.constant dense<0.000000e+00> : vector<8x16x32xf32>
    %68 = tpu.matmul %67, %46, %cst_15 {dimension_numbers = #tpu.dot_dimension_numbers<[2], [1], [1], [2], [0, 0, 0, 1, 1, 2], [0], [0]>} : vector<8x16x16xbf16>, vector<8x16x32xbf16>, vector<8x16x32xf32> -> vector<8x16x32xf32>
    "tpu.trace_stop"() : () -> ()
    %69 = vector.extract_strided_slice %68 {offsets = [0, 0, 0], sizes = [2, 16, 32], strides = [1, 1, 1]} : vector<8x16x32xf32> to vector<2x16x32xf32>
    %70 = vector.extract_strided_slice %68 {offsets = [2, 0, 0], sizes = [2, 16, 32], strides = [1, 1, 1]} : vector<8x16x32xf32> to vector<2x16x32xf32>
    %71 = vector.extract_strided_slice %68 {offsets = [4, 0, 0], sizes = [2, 16, 32], strides = [1, 1, 1]} : vector<8x16x32xf32> to vector<2x16x32xf32>
    %72 = vector.extract_strided_slice %68 {offsets = [6, 0, 0], sizes = [2, 16, 32], strides = [1, 1, 1]} : vector<8x16x32xf32> to vector<2x16x32xf32>
    %73 = tpu.concatenate %69, %70, %71, %72 in 2 : vector<2x16x32xf32>, vector<2x16x32xf32>, vector<2x16x32xf32>, vector<2x16x32xf32> -> vector<2x16x128xf32>
    %74 = vector.shape_cast %73 : vector<2x16x128xf32> to vector<32x128xf32>
    %75 = arith.truncf %74 : vector<32x128xf32> to vector<32x128xbf16>
    %c0_16 = arith.constant 0 : index
    %c0_17 = arith.constant 0 : index
    %76 = vector.load %arg4[%c0_16, %c0_17] : memref<128x128xbf16, #tpu.memory_space<vmem>>, vector<128x128xbf16>
    %cst_18 = arith.constant dense<0.000000e+00> : vector<32x128xf32>
    %77 = tpu.matmul %75, %76, %cst_18 {dimension_numbers = #tpu.dot_dimension_numbers<[1], [0], [0], [1], [0, 0, 1, 1], [], []>} : vector<32x128xbf16>, vector<128x128xbf16>, vector<32x128xf32> -> vector<32x128xf32>
    %78 = arith.addf %0, %77 : vector<32x128xf32>
    %c0_19 = arith.constant 0 : index
    %c0_20 = arith.constant 0 : index
    %79 = vector.load %arg5[%c0_19, %c0_20] : memref<1x128xf32, #tpu.memory_space<vmem>>, vector<1x128xf32>
    %cst_21 = arith.constant dense<0.000000e+00> : vector<32xf32>
    %80 = vector.multi_reduction <add>, %78, %cst_21 [1] : vector<32x128xf32> to vector<32xf32>
    %81 = vector.shape_cast %80 : vector<32xf32> to vector<32x1xf32>
    %cst_22 = arith.constant 1.280000e+02 : f32
    %82 = vector.broadcast %cst_22 : f32 to vector<32x1xf32>
    %83 = arith.divf %81, %82 : vector<32x1xf32>
    %84 = vector.broadcast %83 : vector<32x1xf32> to vector<32x128xf32>
    %85 = arith.subf %78, %84 : vector<32x128xf32>
    %86 = arith.mulf %85, %85 : vector<32x128xf32>
    %cst_23 = arith.constant dense<0.000000e+00> : vector<32xf32>
    %87 = vector.multi_reduction <add>, %86, %cst_23 [1] : vector<32x128xf32> to vector<32xf32>
    %88 = vector.shape_cast %87 : vector<32xf32> to vector<32x1xf32>
    %cst_24 = arith.constant 1.280000e+02 : f32
    %89 = vector.broadcast %cst_24 : f32 to vector<32x1xf32>
    %90 = arith.divf %88, %89 : vector<32x1xf32>
    %cst_25 = arith.constant 9.99999974E-6 : f32
    %91 = vector.broadcast %cst_25 : f32 to vector<32x1xf32>
    %92 = arith.addf %90, %91 : vector<32x1xf32>
    %93 = math.rsqrt %92 : vector<32x1xf32>
    %94 = vector.broadcast %93 : vector<32x1xf32> to vector<32x128xf32>
    %95 = arith.mulf %85, %94 : vector<32x128xf32>
    %96 = vector.broadcast %79 : vector<1x128xf32> to vector<32x128xf32>
    %97 = arith.mulf %95, %96 : vector<32x128xf32>
    %98 = arith.truncf %97 : vector<32x128xf32> to vector<32x128xbf16>
    %c0_26 = arith.constant 0 : index
    %c0_27 = arith.constant 0 : index
    %99 = vector.load %arg6[%c0_26, %c0_27] : memref<128x512xbf16, #tpu.memory_space<vmem>>, vector<128x512xbf16>
    %cst_28 = arith.constant dense<0.000000e+00> : vector<32x512xf32>
    %100 = tpu.matmul %98, %99, %cst_28 {dimension_numbers = #tpu.dot_dimension_numbers<[1], [0], [0], [1], [0, 0, 1, 1], [], []>} : vector<32x128xbf16>, vector<128x512xbf16>, vector<32x512xf32> -> vector<32x512xf32>
    %c0_29 = arith.constant 0 : index
    %c0_30 = arith.constant 0 : index
    %101 = vector.load %arg7[%c0_29, %c0_30] : memref<1x512xf32, #tpu.memory_space<vmem>>, vector<1x512xf32>
    %102 = vector.broadcast %101 : vector<1x512xf32> to vector<32x512xf32>
    %103 = arith.addf %100, %102 : vector<32x512xf32>
    %cst_31 = arith.constant 0.000000e+00 : f32
    %104 = vector.broadcast %cst_31 : f32 to vector<32x512xf32>
    %105 = arith.maximumf %103, %104 : vector<32x512xf32>
    %106 = arith.truncf %105 : vector<32x512xf32> to vector<32x512xbf16>
    %c0_32 = arith.constant 0 : index
    %c0_33 = arith.constant 0 : index
    %107 = vector.load %arg8[%c0_32, %c0_33] : memref<512x128xbf16, #tpu.memory_space<vmem>>, vector<512x128xbf16>
    %cst_34 = arith.constant dense<0.000000e+00> : vector<32x128xf32>
    %108 = tpu.matmul %106, %107, %cst_34 {dimension_numbers = #tpu.dot_dimension_numbers<[1], [0], [0], [1], [0, 0, 1, 1], [], []>} : vector<32x512xbf16>, vector<512x128xbf16>, vector<32x128xf32> -> vector<32x128xf32>
    %c0_35 = arith.constant 0 : index
    %c0_36 = arith.constant 0 : index
    %109 = vector.load %arg9[%c0_35, %c0_36] : memref<1x128xf32, #tpu.memory_space<vmem>>, vector<1x128xf32>
    %110 = vector.broadcast %109 : vector<1x128xf32> to vector<32x128xf32>
    %111 = arith.addf %108, %110 : vector<32x128xf32>
    %112 = arith.addf %78, %111 : vector<32x128xf32>
    %c0_37 = arith.constant 0 : index
    %c0_38 = arith.constant 0 : index
    %113 = vector.load %arg10[%c0_37, %c0_38] : memref<32x128xf32, #tpu.memory_space<vmem>>, vector<32x128xf32>
    tpu.vector_store %arg10[%c0_37, %c0_38], %112 {strides = array<i32>} : memref<32x128xf32, #tpu.memory_space<vmem>>, vector<32x128xf32>,
    return
  }
  func.func @transform_0(%arg0: i32) -> (i32, i32) {
    %c0_i32 = arith.constant 0 : i32
    %c0_i32_0 = arith.constant 0 : i32
    %c0_i32_1 = arith.constant 0 : i32
    return %c0_i32, %c0_i32_0 : i32, i32
  }
  func.func @transform_1(%arg0: i32) -> (i32, i32) {
    %c0_i32 = arith.constant 0 : i32
    %c0_i32_0 = arith.constant 0 : i32
    %c0_i32_1 = arith.constant 0 : i32
    return %c0_i32, %c0_i32_0 : i32, i32
  }
  func.func @transform_2(%arg0: i32) -> (i32, i32) {
    %c0_i32 = arith.constant 0 : i32
    %c0_i32_0 = arith.constant 0 : i32
    %c0_i32_1 = arith.constant 0 : i32
    return %c0_i32, %c0_i32_0 : i32, i32
  }
  func.func @transform_3(%arg0: i32) -> (i32, i32) {
    %c0_i32 = arith.constant 0 : i32
    %c0_i32_0 = arith.constant 0 : i32
    %c0_i32_1 = arith.constant 0 : i32
    return %c0_i32, %c0_i32_0 : i32, i32
  }
  func.func @transform_4(%arg0: i32) -> (i32, i32) {
    %c0_i32 = arith.constant 0 : i32
    %c0_i32_0 = arith.constant 0 : i32
    %c0_i32_1 = arith.constant 0 : i32
    return %c0_i32, %c0_i32_0 : i32, i32
  }
  func.func @transform_5(%arg0: i32) -> (i32, i32) {
    %c0_i32 = arith.constant 0 : i32
    %c0_i32_0 = arith.constant 0 : i32
    %c0_i32_1 = arith.constant 0 : i32
    return %c0_i32, %c0_i32_0 : i32, i32
  }
  func.func @transform_6(%arg0: i32) -> (i32, i32) {
    %c0_i32 = arith.constant 0 : i32
    %c0_i32_0 = arith.constant 0 : i32
    %c0_i32_1 = arith.constant 0 : i32
    return %c0_i32, %c0_i32_0 : i32, i32
  }
  func.func @transform_7(%arg0: i32) -> (i32, i32) {
    %c0_i32 = arith.constant 0 : i32
    %c0_i32_0 = arith.constant 0 : i32
    %c0_i32_1 = arith.constant 0 : i32
    return %c0_i32, %c0_i32_0 : i32, i32
  }
  func.func @transform_8(%arg0: i32) -> (i32, i32) {
    %c0_i32 = arith.constant 0 : i32
    %c0_i32_0 = arith.constant 0 : i32
    %c0_i32_1 = arith.constant 0 : i32
    return %c0_i32, %c0_i32_0 : i32, i32
  }
  func.func @transform_9(%arg0: i32) -> (i32, i32) {
    %c0_i32 = arith.constant 0 : i32
    %c0_i32_0 = arith.constant 0 : i32
    %c0_i32_1 = arith.constant 0 : i32
    return %c0_i32, %c0_i32_0 : i32, i32
  }
}

</mosaic_0001>

<llo_original>
// kernel: transformer_block.1
$region0: #{transformer_block.1}
  #allocation0 [shape = 'u32[]', space=smem, size = 0x4, offset = 0x4, fixed_abs, tag = 'smem constant byte address 0x4 - core index']
  #allocation1 [shape = 'u32[144,128]{1,0:T(1,128)}', space=vmem, size = 0x12000, scoped, tag = 'internal scratch']
  %s0 = inlined_call_operand.hbm [shape: f32[32,128], index: 0, kind: input, shape index: {}]
  %s1 = inlined_call_operand.vmem [shape: f32[1,128], index: 1, kind: input, shape index: {}]
  %s2 = inlined_call_operand.hbm [shape: bf16[128,384], index: 2, kind: input, shape index: {}]
  %s3 = inlined_call_operand.hbm [shape: bf16[128,128], index: 3, kind: input, shape index: {}]
  %s4 = inlined_call_operand.vmem [shape: f32[1,128], index: 4, kind: input, shape index: {}]
  %s5 = inlined_call_operand.hbm [shape: bf16[128,512], index: 5, kind: input, shape index: {}]
  %s6 = inlined_call_operand.vmem [shape: f32[1,512], index: 6, kind: input, shape index: {}]
  %s7 = inlined_call_operand.hbm [shape: bf16[512,128], index: 7, kind: input, shape index: {}]
  %s8 = inlined_call_operand.vmem [shape: f32[1,128], index: 8, kind: input, shape index: {}]
  %s9 = inlined_call_operand.hbm [shape: f32[32,128], index: 9, kind: output, shape index: {}]
  %s10 = sld [smem:[#allocation0]]
  $region66: #{transformer_block.1} parent=0
    _
  %s12 = ssub.s32 1, %s10
  %s13 = scalar_select 0, %s12, %s10
  $region1: #{transformer_block.1} parent=0
    #allocation2 [shape = 'u8[16384]{0}', space=vmem, size = 0x4000, scoped, tag = 'input window, operand 0, single buffered']
    #allocation3 [shape = 's32[1]{0}', space=sflag, size = 0x4, scoped, tag = 'scoped memory for transformer_block.1']
    #allocation4 [shape = 's32[1]{0}', space=sflag, size = 0x4, scoped, tag = 'scoped memory for transformer_block.1']
    #allocation5 [shape = 'u8[98304]{0}', space=vmem, size = 0x18000, scoped, tag = 'input window, operand 2, single buffered']
    #allocation6 [shape = 's32[1]{0}', space=sflag, size = 0x4, scoped, tag = 'scoped memory for transformer_block.1']
    #allocation7 [shape = 'u8[32768]{0}', space=vmem, size = 0x8000, scoped, tag = 'input window, operand 3, single buffered']
    #allocation8 [shape = 'u8[131072]{0}', space=vmem, size = 0x20000, scoped, tag = 'input window, operand 5, single buffered']
    #allocation9 [shape = 's32[1]{0}', space=sflag, size = 0x4, scoped, tag = 'scoped memory for transformer_block.1']
    #allocation10 [shape = 'u8[131072]{0}', space=vmem, size = 0x20000, scoped, tag = 'input window, operand 7, single buffered']
    #allocation11 [shape = 'u8[16384]{0}', space=vmem, size = 0x4000, scoped, tag = 'output window, operand 0, single buffered']
    %14 = vsyncpa [#allocation3], 0
    %15 = vsyncpa [#allocation6], 0
    %16 = vsyncpa [#allocation9], 0
    %17 = vsyncpa [#allocation4], 0
    // Predicated region
    $region2: #{transformer_block.1} parent=1 // pred_check
      _
    $region3: #{transformer_block.1} parent=1 // pred_check_branch
      %19 = sbr.rel (0) target = $region5
    $region4: #{transformer_block.1} parent=1 // pred_region
      %s21 = ssub.s32 512, 512
      %22 = vsyncadd [#allocation3], %s21
      %s23 = sshll.u32 [#allocation2], 4
      %s24 = int_to_ptr.vmem [resolvable:$true] %s23
      %29 = dma.hbm_to_vmem [thread:$0]  %s0, 512, %s24, [#allocation3], 128, 128, 8
    $region5: #{transformer_block.1} parent=1 // pred_fallthru
      _
    // Predicated region
    $region6: #{transformer_block.1} parent=1 // pred_check
      _
    $region7: #{transformer_block.1} parent=1 // pred_check_branch
      %31 = sbr.rel (0) target = $region9
    $region8: #{transformer_block.1} parent=1 // pred_region
      _
    $region9: #{transformer_block.1} parent=1 // pred_fallthru
      _
    // Predicated region
    $region10: #{transformer_block.1} parent=1 // pred_check
      _
    $region11: #{transformer_block.1} parent=1 // pred_check_branch
      %33 = sbr.rel (0) target = $region13
    $region12: #{transformer_block.1} parent=1 // pred_region
      %s35 = ssub.s32 3072, 3072
      %36 = vsyncadd [#allocation6], %s35
      %s37 = sshll.u32 [#allocation5], 4
      %s38 = int_to_ptr.vmem [resolvable:$true] %s37
      %43 = dma.hbm_to_vmem [thread:$0]  %s2, 3072, %s38, [#allocation6], 192, 192, 12
    $region13: #{transformer_block.1} parent=1 // pred_fallthru
      _
    // Predicated region
    $region14: #{transformer_block.1} parent=1 // pred_check
      _
    $region15: #{transformer_block.1} parent=1 // pred_check_branch
      %45 = sbr.rel (0) target = $region17
    $region16: #{transformer_block.1} parent=1 // pred_region
      %s47 = ssub.s32 1024, 1024
      %48 = vsyncadd [#allocation6], %s47
      %s49 = sshll.u32 [#allocation7], 4
      %s50 = int_to_ptr.vmem [resolvable:$true] %s49
      %55 = dma.hbm_to_vmem [thread:$0]  %s3, 1024, %s50, [#allocation6], 64, 64, 4
    $region17: #{transformer_block.1} parent=1 // pred_fallthru
      _
    // Predicated region
    $region18: #{transformer_block.1} parent=1 // pred_check
      _
    $region19: #{transformer_block.1} parent=1 // pred_check_branch
      %57 = sbr.rel (0) target = $region21
    $region20: #{transformer_block.1} parent=1 // pred_region
      _
    $region21: #{transformer_block.1} parent=1 // pred_fallthru
      _
    // Predicated region
    $region22: #{transformer_block.1} parent=1 // pred_check
      _
    $region23: #{transformer_block.1} parent=1 // pred_check_branch
      %59 = sbr.rel (0) target = $region25
    $region24: #{transformer_block.1} parent=1 // pred_region
      %s61 = ssub.s32 4096, 4096
      %62 = vsyncadd [#allocation9], %s61
      %s63 = sshll.u32 [#allocation8], 4
      %s64 = int_to_ptr.vmem [resolvable:$true] %s63
      %69 = dma.hbm_to_vmem [thread:$0]  %s5, 4096, %s64, [#allocation9], 256, 256, 16
    $region25: #{transformer_block.1} parent=1 // pred_fallthru
      _
    // Predicated region
    $region26: #{transformer_block.1} parent=1 // pred_check
      _
    $region27: #{transformer_block.1} parent=1 // pred_check_branch
      %71 = sbr.rel (0) target = $region29
    $region28: #{transformer_block.1} parent=1 // pred_region
      _
    $region29: #{transformer_block.1} parent=1 // pred_fallthru
      _
    // Predicated region
    $region30: #{transformer_block.1} parent=1 // pred_check
      _
    $region31: #{transformer_block.1} parent=1 // pred_check_branch
      %73 = sbr.rel (0) target = $region33
    $region32: #{transformer_block.1} parent=1 // pred_region
      %s75 = ssub.s32 4096, 4096
      %76 = vsyncadd [#allocation9], %s75
      %s77 = sshll.u32 [#allocation10], 4
      %s78 = int_to_ptr.vmem [resolvable:$true] %s77
      %83 = dma.hbm_to_vmem [thread:$0]  %s7, 4096, %s78, [#allocation9], 64, 64, 4
    $region33: #{transformer_block.1} parent=1 // pred_fallthru
      _
    // Predicated region
    $region34: #{transformer_block.1} parent=1 // pred_check
      _
    $region35: #{transformer_block.1} parent=1 // pred_check_branch
      %85 = sbr.rel (0) target = $region37
    $region36: #{transformer_block.1} parent=1 // pred_region
      _
    $region37: #{transformer_block.1} parent=1 // pred_fallthru
      _
    // Predicated region
    $region38: #{transformer_block.1} parent=1 // pred_check
      _
    $region39: #{transformer_block.1} parent=1 // pred_check_branch
      %87 = sbr.rel (0) target = $region41
    $region40: #{transformer_block.1} parent=1 // pred_region
      %88 = dma.done [#allocation3], 512
    $region41: #{transformer_block.1} parent=1 // pred_fallthru
      _
    // Predicated region
    $region42: #{transformer_block.1} parent=1 // pred_check
      _
    $region43: #{transformer_block.1} parent=1 // pred_check_branch
      %90 = sbr.rel (0) target = $region45
    $region44: #{transformer_block.1} parent=1 // pred_region
      %91 = dma.done [#allocation6], 3072
    $region45: #{transformer_block.1} parent=1 // pred_fallthru
      _
    // Predicated region
    $region46: #{transformer_block.1} parent=1 // pred_check
      _
    $region47: #{transformer_block.1} parent=1 // pred_check_branch
      %93 = sbr.rel (0) target = $region49
    $region48: #{transformer_block.1} parent=1 // pred_region
      %94 = dma.done [#allocation6], 1024
    $region49: #{transformer_block.1} parent=1 // pred_fallthru
      _
    // Predicated region
    $region50: #{transformer_block.1} parent=1 // pred_check
      _
    $region51: #{transformer_block.1} parent=1 // pred_check_branch
      %96 = sbr.rel (0) target = $region53
    $region52: #{transformer_block.1} parent=1 // pred_region
      %97 = dma.done [#allocation9], 4096
    $region53: #{transformer_block.1} parent=1 // pred_fallthru
      _
    // Predicated region
    $region54: #{transformer_block.1} parent=1 // pred_check
      _
    $region55: #{transformer_block.1} parent=1 // pred_check_branch
      %99 = sbr.rel (0) target = $region57
    $region56: #{transformer_block.1} parent=1 // pred_region
      %100 = dma.done [#allocation9], 4096
    $region57: #{transformer_block.1} parent=1 // pred_fallthru
      _
    %v102 = vld [vmem:[#allocation2] sm:$0xff]
    %v103 = vld [vmem:[#allocation2 + $0x8] sm:$0xff]
    %v104 = vld [vmem:[#allocation2 + $0x10] sm:$0xff]
    %v105 = vld [vmem:[#allocation2 + $0x18] sm:$0xff]
    %v106 = vld [vmem:[%s1] sm:$0x1]
    %107 = vadd.xlane.f32.xlu0 %v102
    %v108 = vpop.xlane.xlu0 %107
    %109 = vadd.xlane.f32.xlu0 %v103
    %v110 = vpop.xlane.xlu0 %109
    %111 = vadd.xlane.f32.xlu0 %v104
    %v112 = vpop.xlane.xlu0 %111
    %113 = vadd.xlane.f32.xlu0 %v105
    %v114 = vpop.xlane.xlu0 %113
    %v115 = vrcp.pop 128.0
    %v116 = vmul.f32 %v108, %v115
    %v117 = vmul.f32 %v110, %v115
    %v118 = vmul.f32 %v112, %v115
    %v119 = vmul.f32 %v114, %v115
    %v120 = vsub.f32 %v102, %v116
    %v121 = vsub.f32 %v103, %v117
    %v122 = vsub.f32 %v104, %v118
    %v123 = vsub.f32 %v105, %v119
    %v124 = vmul.f32 %v120, %v120
    %v125 = vmul.f32 %v121, %v121
    %v126 = vmul.f32 %v122, %v122
    %v127 = vmul.f32 %v123, %v123
    %128 = vadd.xlane.f32.xlu0 %v124
    %v129 = vpop.xlane.xlu0 %128
    %130 = vadd.xlane.f32.xlu0 %v125
    %v131 = vpop.xlane.xlu0 %130
    %132 = vadd.xlane.f32.xlu0 %v126
    %v133 = vpop.xlane.xlu0 %132
    %134 = vadd.xlane.f32.xlu0 %v127
    %v135 = vpop.xlane.xlu0 %134
    %v136 = vmul.f32 %v129, %v115
    %v137 = vmul.f32 %v131, %v115
    %v138 = vmul.f32 %v133, %v115
    %v139 = vmul.f32 %v135, %v115
    %v140 = vadd.f32 %v136, 1e-05
    %v141 = vadd.f32 %v137, 1e-05
    %v142 = vadd.f32 %v138, 1e-05
    %v143 = vadd.f32 %v139, 1e-05
    %v144 = vrsqrt.pop %v140
    %v145 = vrsqrt.pop %v141
    %v146 = vrsqrt.pop %v142
    %v147 = vrsqrt.pop %v143
    %v148 = vmul.f32 %v120, %v144
    %v149 = vmul.f32 %v121, %v145
    %v150 = vmul.f32 %v122, %v146
    %v151 = vmul.f32 %v123, %v147
    %v153 = vlaneseq
    %v154 = vshrl.u32 %v153, 7
    %v155 = vsub.s32 0, %v154
    %v156 = vrot.slane %v106, %v155
    %v158 = vmul.f32 %v148, %v156
    %v159 = vmul.f32 %v149, %v156
    %v160 = vmul.f32 %v150, %v156
    %v161 = vmul.f32 %v151, %v156
    %v162 = vpack.c.bf16 %v159, %v158
    %v163 = vpack.c.bf16 %v161, %v160
    %v164 = vld [vmem:[#allocation5] sm:$0xff]
    %v165 = vld [vmem:[#allocation5 + $0x8] sm:$0xf]
    %v166 = vld [vmem:[#allocation5 + $0xc] sm:$0xff]
    %v167 = vld [vmem:[#allocation5 + $0x14] sm:$0xf]
    %v168 = vld [vmem:[#allocation5 + $0x18] sm:$0xff]
    %v169 = vld [vmem:[#allocation5 + $0x20] sm:$0xf]
    %v170 = vld [vmem:[#allocation5 + $0x24] sm:$0xff]
    %v171 = vld [vmem:[#allocation5 + $0x2c] sm:$0xf]
    %v172 = vld [vmem:[#allocation5 + $0x30] sm:$0xff]
    %v173 = vld [vmem:[#allocation5 + $0x38] sm:$0xf]
    %v174 = vld [vmem:[#allocation5 + $0x3c] sm:$0xff]
    %v175 = vld [vmem:[#allocation5 + $0x44] sm:$0xf]
    %v176 = vld [vmem:[#allocation5 + $0x48] sm:$0xff]
    %v177 = vld [vmem:[#allocation5 + $0x50] sm:$0xf]
    %v178 = vld [vmem:[#allocation5 + $0x54] sm:$0xff]
    %v179 = vld [vmem:[#allocation5 + $0x5c] sm:$0xf]
    %v180 = vld [vmem:[#allocation5 + $0x60] sm:$0xff]
    %v181 = vld [vmem:[#allocation5 + $0x68] sm:$0xf]
    %v182 = vld [vmem:[#allocation5 + $0x6c] sm:$0xff]
    %v183 = vld [vmem:[#allocation5 + $0x74] sm:$0xf]
    %v184 = vld [vmem:[#allocation5 + $0x78] sm:$0xff]
    %v185 = vld [vmem:[#allocation5 + $0x80] sm:$0xf]
    %v186 = vld [vmem:[#allocation5 + $0x84] sm:$0xff]
    %v187 = vld [vmem:[#allocation5 + $0x8c] sm:$0xf]
    %v188 = vld [vmem:[#allocation5 + $0x90] sm:$0xff]
    %v189 = vld [vmem:[#allocation5 + $0x98] sm:$0xf]
    %v190 = vld [vmem:[#allocation5 + $0x9c] sm:$0xff]
    %v191 = vld [vmem:[#allocation5 + $0xa4] sm:$0xf]
    %v192 = vld [vmem:[#allocation5 + $0xa8] sm:$0xff]
    %v193 = vld [vmem:[#allocation5 + $0xb0] sm:$0xf]
    %v194 = vld [vmem:[#allocation5 + $0xb4] sm:$0xff]
    %v195 = vld [vmem:[#allocation5 + $0xbc] sm:$0xf]
    %v228 = vunpack.c.l.b16 %v164
    %v229 = vunpack.c.h.b16 %v164
    %v230 = vunpack.c.l.b16 %v165
    %v231 = vunpack.c.l.b16 %v166
    %v232 = vunpack.c.h.b16 %v166
    %v233 = vunpack.c.l.b16 %v167
    %v234 = vunpack.c.l.b16 %v168
    %v235 = vunpack.c.h.b16 %v168
    %v236 = vunpack.c.l.b16 %v169
    %v237 = vunpack.c.l.b16 %v170
    %v238 = vunpack.c.h.b16 %v170
    %v239 = vunpack.c.l.b16 %v171
    %v240 = vunpack.c.l.b16 %v172
    %v241 = vunpack.c.h.b16 %v172
    %v242 = vunpack.c.l.b16 %v173
    %v243 = vunpack.c.l.b16 %v174
    %v244 = vunpack.c.h.b16 %v174
    %v245 = vunpack.c.l.b16 %v175
    %v246 = vunpack.c.l.b16 %v176
    %v247 = vunpack.c.h.b16 %v176
    %v248 = vunpack.c.l.b16 %v177
    %v249 = vunpack.c.l.b16 %v178
    %v250 = vunpack.c.h.b16 %v178
    %v251 = vunpack.c.l.b16 %v179
    %v252 = vunpack.c.l.b16 %v180
    %v253 = vunpack.c.h.b16 %v180
    %v254 = vunpack.c.l.b16 %v181
    %v255 = vunpack.c.l.b16 %v182
    %v256 = vunpack.c.h.b16 %v182
    %v257 = vunpack.c.l.b16 %v183
    %v258 = vunpack.c.l.b16 %v184
    %v259 = vunpack.c.h.b16 %v184
    %v260 = vunpack.c.l.b16 %v185
    %v261 = vunpack.c.l.b16 %v186
    %v262 = vunpack.c.h.b16 %v186
    %v263 = vunpack.c.l.b16 %v187
    %v264 = vunpack.c.l.b16 %v188
    %v265 = vunpack.c.h.b16 %v188
    %v266 = vunpack.c.l.b16 %v189
    %v267 = vunpack.c.l.b16 %v190
    %v268 = vunpack.c.h.b16 %v190
    %v269 = vunpack.c.l.b16 %v191
    %v270 = vunpack.c.l.b16 %v192
    %v271 = vunpack.c.h.b16 %v192
    %v272 = vunpack.c.l.b16 %v193
    %v273 = vunpack.c.l.b16 %v194
    %v274 = vunpack.c.h.b16 %v194
    %v275 = vunpack.c.l.b16 %v195
    %v276 = vpack.c.b16 %v231, %v228
    %v277 = vpack.c.b16 %v232, %v229
    %v278 = vpack.c.b16 %v233, %v230
    %v279 = vpack.c.b16 %v237, %v234
    %v280 = vpack.c.b16 %v238, %v235
    %v281 = vpack.c.b16 %v239, %v236
    %v282 = vpack.c.b16 %v243, %v240
    %v283 = vpack.c.b16 %v244, %v241
    %v284 = vpack.c.b16 %v245, %v242
    %v285 = vpack.c.b16 %v249, %v246
    %v286 = vpack.c.b16 %v250, %v247
    %v287 = vpack.c.b16 %v251, %v248
    %v288 = vpack.c.b16 %v255, %v252
    %v289 = vpack.c.b16 %v256, %v253
    %v290 = vpack.c.b16 %v257, %v254
    %v291 = vpack.c.b16 %v261, %v258
    %v292 = vpack.c.b16 %v262, %v259
    %v293 = vpack.c.b16 %v263, %v260
    %v294 = vpack.c.b16 %v267, %v264
    %v295 = vpack.c.b16 %v268, %v265
    %v296 = vpack.c.b16 %v269, %v266
    %v297 = vpack.c.b16 %v273, %v270
    %v298 = vpack.c.b16 %v274, %v271
    %v299 = vpack.c.b16 %v275, %v272
    %324 = vmatprep.subr.bf16.mxu0 %v298
    %325 = vmatpush1.bf16.msra.mxu0 %v297
    %326 = vmatprep.subr.bf16.mxu0 %v295
    %327 = vmatpush1.bf16.msra.mxu0 %v294
    %328 = vmatprep.subr.bf16.mxu0 %v292
    %329 = vmatpush1.bf16.msra.mxu0 %v291
    %330 = vmatprep.subr.bf16.mxu0 %v289
    %331 = vmatpush1.bf16.msra.mxu0 %v288
    %332 = vmatprep.subr.bf16.mxu0 %v286
    %333 = vmatpush1.bf16.msra.mxu0 %v285
    %334 = vmatprep.subr.bf16.mxu0 %v283
    %335 = vmatpush1.bf16.msra.mxu0 %v282
    %336 = vmatprep.subr.bf16.mxu0 %v280
    %337 = vmatpush1.bf16.msra.mxu0 %v279
    %338 = vmatprep.subr.bf16.mxu0 %v277
    %339 = vmatpush1.bf16.msra.mxu0 %v276
    %340 = vmatprep.subr.bf16.mxu0 0
    %341 = vmatpush2.bf16.msra.mxu0 0
    %342 = vmatprep.subr.bf16.mxu0 0
    %343 = vmatpush2.bf16.msra.mxu0 0
    %344 = vmatprep.subr.bf16.mxu0 0
    %345 = vmatpush2.bf16.msra.mxu0 0
    %346 = vmatprep.subr.bf16.mxu0 0
    %347 = vmatpush2.bf16.msra.mxu0 0
    %348 = vmatprep.subr.bf16.mxu0 0
    %349 = vmatpush2.bf16.msra.mxu0 0
    %350 = vmatprep.subr.bf16.mxu0 0
    %351 = vmatpush2.bf16.msra.mxu0 0
    %352 = vmatprep.subr.bf16.mxu0 0
    %353 = vmatpush2.bf16.msra.mxu0 0
    %354 = vmatprep.subr.bf16.mxu0 0
    %355 = vmatpush2.bf16.msra.mxu0 0
    %356 = vmatprep.mubr.bf16.mxu0 0
    %357 = vmatmul.mubr.bf16.gmra.mxu0 %v162
    %v358 = vpop.f32.mrf.mxu0
    %v359 = vadd.f32 0.0, %v358
    %v360 = vpop.f32.mrf.mxu0
    %v361 = vadd.f32 0.0, %v360
    %v362 = vpop.f32.mrf.mxu0
    %v363 = vadd.f32 0.0, %v362
    %v364 = vpop.f32.mrf.mxu0
    %v365 = vadd.f32 0.0, %v364
    %366 = vmatprep.mubr.bf16.mxu0 0
    %367 = vmatmul.mubr.bf16.gmra.mxu0 %v163
    %v368 = vpop.f32.mrf.mxu0
    %v369 = vadd.f32 0.0, %v368
    %v370 = vpop.f32.mrf.mxu0
    %v371 = vadd.f32 0.0, %v370
    %v372 = vpop.f32.mrf.mxu0
    %v373 = vadd.f32 0.0, %v372
    %v374 = vpop.f32.mrf.mxu0
    %v375 = vadd.f32 0.0, %v374
    %376 = vdwg.mxu0
    %377 = vmatprep.subr.bf16.mxu0 0
    %378 = vmatpush1.bf16.msra.mxu0 %v299
    %379 = vmatprep.subr.bf16.mxu0 0
    %380 = vmatpush1.bf16.msra.mxu0 %v296
    %381 = vmatprep.subr.bf16.mxu0 0
    %382 = vmatpush1.bf16.msra.mxu0 %v293
    %383 = vmatprep.subr.bf16.mxu0 0
    %384 = vmatpush1.bf16.msra.mxu0 %v290
    %385 = vmatprep.subr.bf16.mxu0 0
    %386 = vmatpush1.bf16.msra.mxu0 %v287
    %387 = vmatprep.subr.bf16.mxu0 0
    %388 = vmatpush1.bf16.msra.mxu0 %v284
    %389 = vmatprep.subr.bf16.mxu0 0
    %390 = vmatpush1.bf16.msra.mxu0 %v281
    %391 = vmatprep.subr.bf16.mxu0 0
    %392 = vmatpush1.bf16.msra.mxu0 %v278
    %393 = vmatprep.subr.bf16.mxu0 0
    %394 = vmatpush2.bf16.msra.mxu0 0
    %395 = vmatprep.subr.bf16.mxu0 0
    %396 = vmatpush2.bf16.msra.mxu0 0
    %397 = vmatprep.subr.bf16.mxu0 0
    %398 = vmatpush2.bf16.msra.mxu0 0
    %399 = vmatprep.subr.bf16.mxu0 0
    %400 = vmatpush2.bf16.msra.mxu0 0
    %401 = vmatprep.subr.bf16.mxu0 0
    %402 = vmatpush2.bf16.msra.mxu0 0
    %403 = vmatprep.subr.bf16.mxu0 0
    %404 = vmatpush2.bf16.msra.mxu0 0
    %405 = vmatprep.subr.bf16.mxu0 0
    %406 = vmatpush2.bf16.msra.mxu0 0
    %407 = vmatprep.subr.bf16.mxu0 0
    %408 = vmatpush2.bf16.msra.mxu0 0
    %409 = vmatprep.mubr.bf16.mxu0 0
    %410 = vmatmul.mubr.bf16.gmra.mxu0 %v162
    %v411 = vpop.f32.mrf.mxu0
    %v412 = vadd.f32 0.0, %v411
    %v413 = vpop.f32.mrf.mxu0
    %v414 = vpop.f32.mrf.mxu0
    %v415 = vadd.f32 0.0, %v414
    %v416 = vpop.f32.mrf.mxu0
    %417 = vmatprep.mubr.bf16.mxu0 0
    %418 = vmatmul.mubr.bf16.gmra.mxu0 %v163
    %v419 = vpop.f32.mrf.mxu0
    %v420 = vadd.f32 0.0, %v419
    %v421 = vpop.f32.mrf.mxu0
    %v422 = vpop.f32.mrf.mxu0
    %v423 = vadd.f32 0.0, %v422
    %v424 = vpop.f32.mrf.mxu0
    %425 = vdwg.mxu0
    %v426 = vpack.c.bf16 %v363, %v359
    %v427 = vpack.c.bf16 %v373, %v369
    %v428 = vpack.c.bf16 %v365, %v361
    %v429 = vpack.c.bf16 %v375, %v371
    %v430 = vpack.c.bf16 %v415, %v412
    %v431 = vpack.c.bf16 %v423, %v420
    %434 = vrot.lane.b32.xlu0 %v426, 96
    %v435 = vpop.permute.xlu0 %434
    %436 = vrot.lane.b32.xlu0 %v427, 96
    %v437 = vpop.permute.xlu0 %436
    %438 = vrot.lane.b32.xlu0 %v426, 64
    %v439 = vpop.permute.xlu0 %438
    %440 = vrot.lane.b32.xlu0 %v427, 64
    %v441 = vpop.permute.xlu0 %440
    %442 = vrot.lane.b32.xlu0 %v426, 32
    %v443 = vpop.permute.xlu0 %442
    %444 = vrot.lane.b32.xlu0 %v427, 32
    %v445 = vpop.permute.xlu0 %444
    %448 = vrot.lane.b32.xlu0 %v428, 96
    %v449 = vpop.permute.xlu0 %448
    %450 = vrot.lane.b32.xlu0 %v429, 96
    %v451 = vpop.permute.xlu0 %450
    %452 = vrot.lane.b32.xlu0 %v428, 64
    %v453 = vpop.permute.xlu0 %452
    %454 = vrot.lane.b32.xlu0 %v429, 64
    %v455 = vpop.permute.xlu0 %454
    %456 = vrot.lane.b32.xlu0 %v428, 32
    %v457 = vpop.permute.xlu0 %456
    %458 = vrot.lane.b32.xlu0 %v429, 32
    %v459 = vpop.permute.xlu0 %458
    %462 = vrot.lane.b32.xlu0 %v430, 96
    %v463 = vpop.permute.xlu0 %462
    %464 = vrot.lane.b32.xlu0 %v431, 96
    %v465 = vpop.permute.xlu0 %464
    %468 = vrot.lane.b32.xlu0 %v430, 64
    %v469 = vpop.permute.xlu0 %468
    %470 = vrot.lane.b32.xlu0 %v431, 64
    %v471 = vpop.permute.xlu0 %470
    %474 = vrot.lane.b32.xlu0 %v430, 32
    %v475 = vpop.permute.xlu0 %474
    %476 = vrot.lane.b32.xlu0 %v431, 32
    %v477 = vpop.permute.xlu0 %476
    %v480 = vlaneseq
    %v481 = vshrl.u32 %v480, 7
    %v482 = vadd.s32 %v481, 8
    %v483 = vlaneseq
    %v484 = vand.u32 %v483, 127
    %vm485 = vcmp.ge.s32.totalorder %v481, %v484
    %vm486 = vcmp.ge.s32.totalorder %v482, %v484
    %v487 = vsel %vm485, 0.0, -1e+30
    %v488 = vsel %vm486, 0.0, -1e+30
    %vm489 = vcmask 261120
    %v491 = vsel %vm489, %v426, 0
    %v494 = vsel %vm489, %v428, 0
    %496 = vmatprep.subr.bf16.mxu0 0
    %497 = vmatpush1.bf16.xpose.msra.mxu0 0
    %498 = vmatprep.subr.bf16.mxu0 0
    %499 = vmatpush1.bf16.xpose.msra.mxu0 0
    %500 = vmatprep.subr.bf16.mxu0 0
    %501 = vmatpush1.bf16.xpose.msra.mxu0 0
    %502 = vmatprep.subr.bf16.mxu0 0
    %503 = vmatpush1.bf16.xpose.msra.mxu0 0
    %504 = vmatprep.subr.bf16.mxu0 0
    %505 = vmatpush1.bf16.xpose.msra.mxu0 0
    %506 = vmatprep.subr.bf16.mxu0 0
    %507 = vmatpush1.bf16.xpose.msra.mxu0 0
    %508 = vmatprep.subr.bf16.mxu0 0
    %509 = vmatpush1.bf16.xpose.msra.mxu0 0
    %510 = vmatprep.subr.bf16.mxu0 0
    %511 = vmatpush1.bf16.xpose.msra.mxu0 %v494
    %512 = vmatprep.subr.bf16.mxu0 0
    %513 = vmatpush2.bf16.xpose.msra.mxu0 0
    %514 = vmatprep.subr.bf16.mxu0 0
    %515 = vmatpush2.bf16.xpose.msra.mxu0 0
    %516 = vmatprep.subr.bf16.mxu0 0
    %517 = vmatpush2.bf16.xpose.msra.mxu0 0
    %518 = vmatprep.subr.bf16.mxu0 0
    %519 = vmatpush2.bf16.xpose.msra.mxu0 0
    %520 = vmatprep.subr.bf16.mxu0 0
    %521 = vmatpush2.bf16.xpose.msra.mxu0 0
    %522 = vmatprep.subr.bf16.mxu0 0
    %523 = vmatpush2.bf16.xpose.msra.mxu0 0
    %524 = vmatprep.subr.bf16.mxu0 0
    %525 = vmatpush2.bf16.xpose.msra.mxu0 0
    %526 = vmatprep.subr.bf16.mxu0 0
    %527 = vmatpush2.bf16.xpose.msra.mxu0 0
    %528 = vmatprep.mubr.bf16.mxu0 0
    %529 = vmatmul.mubr.bf16.gmra.mxu0 %v491
    %v530 = vpop.f32.mrf.mxu0
    %v531 = vadd.f32 %v487, %v530
    %v532 = vpop.f32.mrf.mxu0
    %v533 = vpop.f32.mrf.mxu0
    %v534 = vadd.f32 %v488, %v533
    %v535 = vpop.f32.mrf.mxu0
    %536 = vdwg.mxu0
    %v538 = vsel %vm489, %v427, 0
    %v541 = vsel %vm489, %v429, 0
    %543 = vmatprep.subr.bf16.mxu0 0
    %544 = vmatpush1.bf16.xpose.msra.mxu0 0
    %545 = vmatprep.subr.bf16.mxu0 0
    %546 = vmatpush1.bf16.xpose.msra.mxu0 0
    %547 = vmatprep.subr.bf16.mxu0 0
    %548 = vmatpush1.bf16.xpose.msra.mxu0 0
    %549 = vmatprep.subr.bf16.mxu0 0
    %550 = vmatpush1.bf16.xpose.msra.mxu0 0
    %551 = vmatprep.subr.bf16.mxu0 0
    %552 = vmatpush1.bf16.xpose.msra.mxu0 0
    %553 = vmatprep.subr.bf16.mxu0 0
    %554 = vmatpush1.bf16.xpose.msra.mxu0 0
    %555 = vmatprep.subr.bf16.mxu0 0
    %556 = vmatpush1.bf16.xpose.msra.mxu0 0
    %557 = vmatprep.subr.bf16.mxu0 0
    %558 = vmatpush1.bf16.xpose.msra.mxu0 %v541
    %559 = vmatprep.subr.bf16.mxu0 0
    %560 = vmatpush2.bf16.xpose.msra.mxu0 0
    %561 = vmatprep.subr.bf16.mxu0 0
    %562 = vmatpush2.bf16.xpose.msra.mxu0 0
    %563 = vmatprep.subr.bf16.mxu0 0
    %564 = vmatpush2.bf16.xpose.msra.mxu0 0
    %565 = vmatprep.subr.bf16.mxu0 0
    %566 = vmatpush2.bf16.xpose.msra.mxu0 0
    %567 = vmatprep.subr.bf16.mxu0 0
    %568 = vmatpush2.bf16.xpose.msra.mxu0 0
    %569 = vmatprep.subr.bf16.mxu0 0
    %570 = vmatpush2.bf16.xpose.msra.mxu0 0
    %571 = vmatprep.subr.bf16.mxu0 0
    %572 = vmatpush2.bf16.xpose.msra.mxu0 0
    %573 = vmatprep.subr.bf16.mxu0 0
    %574 = vmatpush2.bf16.xpose.msra.mxu0 0
    %575 = vmatprep.mubr.bf16.mxu0 0
    %576 = vmatmul.mubr.bf16.gmra.mxu0 %v538
    %v577 = vpop.f32.mrf.mxu0
    %v578 = vadd.f32 %v487, %v577
    %v579 = vpop.f32.mrf.mxu0
    %v580 = vpop.f32.mrf.mxu0
    %v581 = vadd.f32 %v488, %v580
    %v582 = vpop.f32.mrf.mxu0
    %583 = vdwg.mxu0
    %v585 = vsel %vm489, %v435, 0
    %v588 = vsel %vm489, %v449, 0
    %590 = vmatprep.subr.bf16.mxu0 0
    %591 = vmatpush1.bf16.xpose.msra.mxu0 0
    %592 = vmatprep.subr.bf16.mxu0 0
    %593 = vmatpush1.bf16.xpose.msra.mxu0 0
    %594 = vmatprep.subr.bf16.mxu0 0
    %595 = vmatpush1.bf16.xpose.msra.mxu0 0
    %596 = vmatprep.subr.bf16.mxu0 0
    %597 = vmatpush1.bf16.xpose.msra.mxu0 0
    %598 = vmatprep.subr.bf16.mxu0 0
    %599 = vmatpush1.bf16.xpose.msra.mxu0 0
    %600 = vmatprep.subr.bf16.mxu0 0
    %601 = vmatpush1.bf16.xpose.msra.mxu0 0
    %602 = vmatprep.subr.bf16.mxu0 0
    %603 = vmatpush1.bf16.xpose.msra.mxu0 0
    %604 = vmatprep.subr.bf16.mxu0 0
    %605 = vmatpush1.bf16.xpose.msra.mxu0 %v588
    %606 = vmatprep.subr.bf16.mxu0 0
    %607 = vmatpush2.bf16.xpose.msra.mxu0 0
    %608 = vmatprep.subr.bf16.mxu0 0
    %609 = vmatpush2.bf16.xpose.msra.mxu0 0
    %610 = vmatprep.subr.bf16.mxu0 0
    %611 = vmatpush2.bf16.xpose.msra.mxu0 0
    %612 = vmatprep.subr.bf16.mxu0 0
    %613 = vmatpush2.bf16.xpose.msra.mxu0 0
    %614 = vmatprep.subr.bf16.mxu0 0
    %615 = vmatpush2.bf16.xpose.msra.mxu0 0
    %616 = vmatprep.subr.bf16.mxu0 0
    %617 = vmatpush2.bf16.xpose.msra.mxu0 0
    %618 = vmatprep.subr.bf16.mxu0 0
    %619 = vmatpush2.bf16.xpose.msra.mxu0 0
    %620 = vmatprep.subr.bf16.mxu0 0
    %621 = vmatpush2.bf16.xpose.msra.mxu0 0
    %622 = vmatprep.mubr.bf16.mxu0 0
    %623 = vmatmul.mubr.bf16.gmra.mxu0 %v585
    %v624 = vpop.f32.mrf.mxu0
    %v625 = vadd.f32 %v487, %v624
    %v626 = vpop.f32.mrf.mxu0
    %v627 = vpop.f32.mrf.mxu0
    %v628 = vadd.f32 %v488, %v627
    %v629 = vpop.f32.mrf.mxu0
    %630 = vdwg.mxu0
    %v632 = vsel %vm489, %v437, 0
    %v635 = vsel %vm489, %v451, 0
    %637 = vmatprep.subr.bf16.mxu0 0
    %638 = vmatpush1.bf16.xpose.msra.mxu0 0
    %639 = vmatprep.subr.bf16.mxu0 0
    %640 = vmatpush1.bf16.xpose.msra.mxu0 0
    %641 = vmatprep.subr.bf16.mxu0 0
    %642 = vmatpush1.bf16.xpose.msra.mxu0 0
    %643 = vmatprep.subr.bf16.mxu0 0
    %644 = vmatpush1.bf16.xpose.msra.mxu0 0
    %645 = vmatprep.subr.bf16.mxu0 0
    %646 = vmatpush1.bf16.xpose.msra.mxu0 0
    %647 = vmatprep.subr.bf16.mxu0 0
    %648 = vmatpush1.bf16.xpose.msra.mxu0 0
    %649 = vmatprep.subr.bf16.mxu0 0
    %650 = vmatpush1.bf16.xpose.msra.mxu0 0
    %651 = vmatprep.subr.bf16.mxu0 0
    %652 = vmatpush1.bf16.xpose.msra.mxu0 %v635
    %653 = vmatprep.subr.bf16.mxu0 0
    %654 = vmatpush2.bf16.xpose.msra.mxu0 0
    %655 = vmatprep.subr.bf16.mxu0 0
    %656 = vmatpush2.bf16.xpose.msra.mxu0 0
    %657 = vmatprep.subr.bf16.mxu0 0
    %658 = vmatpush2.bf16.xpose.msra.mxu0 0
    %659 = vmatprep.subr.bf16.mxu0 0
    %660 = vmatpush2.bf16.xpose.msra.mxu0 0
    %661 = vmatprep.subr.bf16.mxu0 0
    %662 = vmatpush2.bf16.xpose.msra.mxu0 0
    %663 = vmatprep.subr.bf16.mxu0 0
    %664 = vmatpush2.bf16.xpose.msra.mxu0 0
    %665 = vmatprep.subr.bf16.mxu0 0
    %666 = vmatpush2.bf16.xpose.msra.mxu0 0
    %667 = vmatprep.subr.bf16.mxu0 0
    %668 = vmatpush2.bf16.xpose.msra.mxu0 0
    %669 = vmatprep.mubr.bf16.mxu0 0
    %670 = vmatmul.mubr.bf16.gmra.mxu0 %v632
    %v671 = vpop.f32.mrf.mxu0
    %v672 = vadd.f32 %v487, %v671
    %v673 = vpop.f32.mrf.mxu0
    %v674 = vpop.f32.mrf.mxu0
    %v675 = vadd.f32 %v488, %v674
    %v676 = vpop.f32.mrf.mxu0
    %677 = vdwg.mxu0
    %v679 = vsel %vm489, %v439, 0
    %v682 = vsel %vm489, %v453, 0
    %684 = vmatprep.subr.bf16.mxu0 0
    %685 = vmatpush1.bf16.xpose.msra.mxu0 0
    %686 = vmatprep.subr.bf16.mxu0 0
    %687 = vmatpush1.bf16.xpose.msra.mxu0 0
    %688 = vmatprep.subr.bf16.mxu0 0
    %689 = vmatpush1.bf16.xpose.msra.mxu0 0
    %690 = vmatprep.subr.bf16.mxu0 0
    %691 = vmatpush1.bf16.xpose.msra.mxu0 0
    %692 = vmatprep.subr.bf16.mxu0 0
    %693 = vmatpush1.bf16.xpose.msra.mxu0 0
    %694 = vmatprep.subr.bf16.mxu0 0
    %695 = vmatpush1.bf16.xpose.msra.mxu0 0
    %696 = vmatprep.subr.bf16.mxu0 0
    %697 = vmatpush1.bf16.xpose.msra.mxu0 0
    %698 = vmatprep.subr.bf16.mxu0 0
    %699 = vmatpush1.bf16.xpose.msra.mxu0 %v682
    %700 = vmatprep.subr.bf16.mxu0 0
    %701 = vmatpush2.bf16.xpose.msra.mxu0 0
    %702 = vmatprep.subr.bf16.mxu0 0
    %703 = vmatpush2.bf16.xpose.msra.mxu0 0
    %704 = vmatprep.subr.bf16.mxu0 0
    %705 = vmatpush2.bf16.xpose.msra.mxu0 0
    %706 = vmatprep.subr.bf16.mxu0 0
    %707 = vmatpush2.bf16.xpose.msra.mxu0 0
    %708 = vmatprep.subr.bf16.mxu0 0
    %709 = vmatpush2.bf16.xpose.msra.mxu0 0
    %710 = vmatprep.subr.bf16.mxu0 0
    %711 = vmatpush2.bf16.xpose.msra.mxu0 0
    %712 = vmatprep.subr.bf16.mxu0 0
    %713 = vmatpush2.bf16.xpose.msra.mxu0 0
    %714 = vmatprep.subr.bf16.mxu0 0
    %715 = vmatpush2.bf16.xpose.msra.mxu0 0
    %716 = vmatprep.mubr.bf16.mxu0 0
    %717 = vmatmul.mubr.bf16.gmra.mxu0 %v679
    %v718 = vpop.f32.mrf.mxu0
    %v719 = vadd.f32 %v487, %v718
    %v720 = vpop.f32.mrf.mxu0
    %v721 = vpop.f32.mrf.mxu0
    %v722 = vadd.f32 %v488, %v721
    %v723 = vpop.f32.mrf.mxu0
    %724 = vdwg.mxu0
    %v726 = vsel %vm489, %v441, 0
    %v729 = vsel %vm489, %v455, 0
    %731 = vmatprep.subr.bf16.mxu0 0
    %732 = vmatpush1.bf16.xpose.msra.mxu0 0
    %733 = vmatprep.subr.bf16.mxu0 0
    %734 = vmatpush1.bf16.xpose.msra.mxu0 0
    %735 = vmatprep.subr.bf16.mxu0 0
    %736 = vmatpush1.bf16.xpose.msra.mxu0 0
    %737 = vmatprep.subr.bf16.mxu0 0
    %738 = vmatpush1.bf16.xpose.msra.mxu0 0
    %739 = vmatprep.subr.bf16.mxu0 0
    %740 = vmatpush1.bf16.xpose.msra.mxu0 0
    %741 = vmatprep.subr.bf16.mxu0 0
    %742 = vmatpush1.bf16.xpose.msra.mxu0 0
    %743 = vmatprep.subr.bf16.mxu0 0
    %744 = vmatpush1.bf16.xpose.msra.mxu0 0
    %745 = vmatprep.subr.bf16.mxu0 0
    %746 = vmatpush1.bf16.xpose.msra.mxu0 %v729
    %747 = vmatprep.subr.bf16.mxu0 0
    %748 = vmatpush2.bf16.xpose.msra.mxu0 0
    %749 = vmatprep.subr.bf16.mxu0 0
    %750 = vmatpush2.bf16.xpose.msra.mxu0 0
    %751 = vmatprep.subr.bf16.mxu0 0
    %752 = vmatpush2.bf16.xpose.msra.mxu0 0
    %753 = vmatprep.subr.bf16.mxu0 0
    %754 = vmatpush2.bf16.xpose.msra.mxu0 0
    %755 = vmatprep.subr.bf16.mxu0 0
    %756 = vmatpush2.bf16.xpose.msra.mxu0 0
    %757 = vmatprep.subr.bf16.mxu0 0
    %758 = vmatpush2.bf16.xpose.msra.mxu0 0
    %759 = vmatprep.subr.bf16.mxu0 0
    %760 = vmatpush2.bf16.xpose.msra.mxu0 0
    %761 = vmatprep.subr.bf16.mxu0 0
    %762 = vmatpush2.bf16.xpose.msra.mxu0 0
    %763 = vmatprep.mubr.bf16.mxu0 0
    %764 = vmatmul.mubr.bf16.gmra.mxu0 %v726
    %v765 = vpop.f32.mrf.mxu0
    %v766 = vadd.f32 %v487, %v765
    %v767 = vpop.f32.mrf.mxu0
    %v768 = vpop.f32.mrf.mxu0
    %v769 = vadd.f32 %v488, %v768
    %v770 = vpop.f32.mrf.mxu0
    %771 = vdwg.mxu0
    %v773 = vsel %vm489, %v443, 0
    %v776 = vsel %vm489, %v457, 0
    %778 = vmatprep.subr.bf16.mxu0 0
    %779 = vmatpush1.bf16.xpose.msra.mxu0 0
    %780 = vmatprep.subr.bf16.mxu0 0
    %781 = vmatpush1.bf16.xpose.msra.mxu0 0
    %782 = vmatprep.subr.bf16.mxu0 0
    %783 = vmatpush1.bf16.xpose.msra.mxu0 0
    %784 = vmatprep.subr.bf16.mxu0 0
    %785 = vmatpush1.bf16.xpose.msra.mxu0 0
    %786 = vmatprep.subr.bf16.mxu0 0
    %787 = vmatpush1.bf16.xpose.msra.mxu0 0
    %788 = vmatprep.subr.bf16.mxu0 0
    %789 = vmatpush1.bf16.xpose.msra.mxu0 0
    %790 = vmatprep.subr.bf16.mxu0 0
    %791 = vmatpush1.bf16.xpose.msra.mxu0 0
    %792 = vmatprep.subr.bf16.mxu0 0
    %793 = vmatpush1.bf16.xpose.msra.mxu0 %v776
    %794 = vmatprep.subr.bf16.mxu0 0
    %795 = vmatpush2.bf16.xpose.msra.mxu0 0
    %796 = vmatprep.subr.bf16.mxu0 0
    %797 = vmatpush2.bf16.xpose.msra.mxu0 0
    %798 = vmatprep.subr.bf16.mxu0 0
    %799 = vmatpush2.bf16.xpose.msra.mxu0 0
    %800 = vmatprep.subr.bf16.mxu0 0
    %801 = vmatpush2.bf16.xpose.msra.mxu0 0
    %802 = vmatprep.subr.bf16.mxu0 0
    %803 = vmatpush2.bf16.xpose.msra.mxu0 0
    %804 = vmatprep.subr.bf16.mxu0 0
    %805 = vmatpush2.bf16.xpose.msra.mxu0 0
    %806 = vmatprep.subr.bf16.mxu0 0
    %807 = vmatpush2.bf16.xpose.msra.mxu0 0
    %808 = vmatprep.subr.bf16.mxu0 0
    %809 = vmatpush2.bf16.xpose.msra.mxu0 0
    %810 = vmatprep.mubr.bf16.mxu0 0
    %811 = vmatmul.mubr.bf16.gmra.mxu0 %v773
    %v812 = vpop.f32.mrf.mxu0
    %v813 = vadd.f32 %v487, %v812
    %v814 = vpop.f32.mrf.mxu0
    %v815 = vpop.f32.mrf.mxu0
    %v816 = vadd.f32 %v488, %v815
    %v817 = vpop.f32.mrf.mxu0
    %818 = vdwg.mxu0
    %v820 = vsel %vm489, %v445, 0
    %v823 = vsel %vm489, %v459, 0
    %825 = vmatprep.subr.bf16.mxu0 0
    %826 = vmatpush1.bf16.xpose.msra.mxu0 0
    %827 = vmatprep.subr.bf16.mxu0 0
    %828 = vmatpush1.bf16.xpose.msra.mxu0 0
    %829 = vmatprep.subr.bf16.mxu0 0
    %830 = vmatpush1.bf16.xpose.msra.mxu0 0
    %831 = vmatprep.subr.bf16.mxu0 0
    %832 = vmatpush1.bf16.xpose.msra.mxu0 0
    %833 = vmatprep.subr.bf16.mxu0 0
    %834 = vmatpush1.bf16.xpose.msra.mxu0 0
    %835 = vmatprep.subr.bf16.mxu0 0
    %836 = vmatpush1.bf16.xpose.msra.mxu0 0
    %837 = vmatprep.subr.bf16.mxu0 0
    %838 = vmatpush1.bf16.xpose.msra.mxu0 0
    %839 = vmatprep.subr.bf16.mxu0 0
    %840 = vmatpush1.bf16.xpose.msra.mxu0 %v823
    %841 = vmatprep.subr.bf16.mxu0 0
    %842 = vmatpush2.bf16.xpose.msra.mxu0 0
    %843 = vmatprep.subr.bf16.mxu0 0
    %844 = vmatpush2.bf16.xpose.msra.mxu0 0
    %845 = vmatprep.subr.bf16.mxu0 0
    %846 = vmatpush2.bf16.xpose.msra.mxu0 0
    %847 = vmatprep.subr.bf16.mxu0 0
    %848 = vmatpush2.bf16.xpose.msra.mxu0 0
    %849 = vmatprep.subr.bf16.mxu0 0
    %850 = vmatpush2.bf16.xpose.msra.mxu0 0
    %851 = vmatprep.subr.bf16.mxu0 0
    %852 = vmatpush2.bf16.xpose.msra.mxu0 0
    %853 = vmatprep.subr.bf16.mxu0 0
    %854 = vmatpush2.bf16.xpose.msra.mxu0 0
    %855 = vmatprep.subr.bf16.mxu0 0
    %856 = vmatpush2.bf16.xpose.msra.mxu0 0
    %857 = vmatprep.mubr.bf16.mxu0 0
    %858 = vmatmul.mubr.bf16.gmra.mxu0 %v820
    %v859 = vpop.f32.mrf.mxu0
    %v860 = vadd.f32 %v487, %v859
    %v861 = vpop.f32.mrf.mxu0
    %v862 = vpop.f32.mrf.mxu0
    %v863 = vadd.f32 %v488, %v862
    %v864 = vpop.f32.mrf.mxu0
    %865 = vdwg.mxu0
    %vm866 = vcmask 130048
    %v867 = vsel %vm866, %v531, -inf
    %868 = vmax.xlane.f32.xlu0 %v867
    %v869 = vpop.xlane.xlu0 %868
    %v870 = vsel %vm866, %v534, -inf
    %871 = vmax.xlane.f32.xlu0 %v870
    %v872 = vpop.xlane.xlu0 %871
    %v873 = vsel %vm866, %v578, -inf
    %874 = vmax.xlane.f32.xlu0 %v873
    %v875 = vpop.xlane.xlu0 %874
    %v876 = vsel %vm866, %v581, -inf
    %877 = vmax.xlane.f32.xlu0 %v876
    %v878 = vpop.xlane.xlu0 %877
    %v879 = vsel %vm866, %v625, -inf
    %880 = vmax.xlane.f32.xlu0 %v879
    %v881 = vpop.xlane.xlu0 %880
    %v882 = vsel %vm866, %v628, -inf
    %883 = vmax.xlane.f32.xlu0 %v882
    %v884 = vpop.xlane.xlu0 %883
    %v885 = vsel %vm866, %v672, -inf
    %886 = vmax.xlane.f32.xlu0 %v885
    %v887 = vpop.xlane.xlu0 %886
    %v888 = vsel %vm866, %v675, -inf
    %889 = vmax.xlane.f32.xlu0 %v888
    %v890 = vpop.xlane.xlu0 %889
    %v891 = vsel %vm866, %v719, -inf
    %892 = vmax.xlane.f32.xlu0 %v891
    %v893 = vpop.xlane.xlu0 %892
    %v894 = vsel %vm866, %v722, -inf
    %895 = vmax.xlane.f32.xlu0 %v894
    %v896 = vpop.xlane.xlu0 %895
    %v897 = vsel %vm866, %v766, -inf
    %898 = vmax.xlane.f32.xlu0 %v897
    %v899 = vpop.xlane.xlu0 %898
    %v900 = vsel %vm866, %v769, -inf
    %901 = vmax.xlane.f32.xlu0 %v900
    %v902 = vpop.xlane.xlu0 %901
    %v903 = vsel %vm866, %v813, -inf
    %904 = vmax.xlane.f32.xlu0 %v903
    %v905 = vpop.xlane.xlu0 %904
    %v906 = vsel %vm866, %v816, -inf
    %907 = vmax.xlane.f32.xlu0 %v906
    %v908 = vpop.xlane.xlu0 %907
    %v909 = vsel %vm866, %v860, -inf
    %910 = vmax.xlane.f32.xlu0 %v909
    %v911 = vpop.xlane.xlu0 %910
    %v912 = vsel %vm866, %v863, -inf
    %913 = vmax.xlane.f32.xlu0 %v912
    %v914 = vpop.xlane.xlu0 %913
    %v915 = vsub.f32 %v531, %v869
    %v916 = vsub.f32 %v534, %v872
    %v917 = vsub.f32 %v578, %v875
    %v918 = vsub.f32 %v581, %v878
    %v919 = vsub.f32 %v625, %v881
    %v920 = vsub.f32 %v628, %v884
    %v921 = vsub.f32 %v672, %v887
    %v922 = vsub.f32 %v675, %v890
    %v923 = vsub.f32 %v719, %v893
    %v924 = vsub.f32 %v722, %v896
    %v925 = vsub.f32 %v766, %v899
    %v926 = vsub.f32 %v769, %v902
    %v927 = vsub.f32 %v813, %v905
    %v928 = vsub.f32 %v816, %v908
    %v929 = vsub.f32 %v860, %v911
    %v930 = vsub.f32 %v863, %v914
    %v931 = vmul.f32 %v915, 1.442695
    %v932 = vpow.pop %v931
    %v933 = vmul.f32 %v916, 1.442695
    %v934 = vpow.pop %v933
    %v935 = vmul.f32 %v917, 1.442695
    %v936 = vpow.pop %v935
    %v937 = vmul.f32 %v918, 1.442695
    %v938 = vpow.pop %v937
    %v939 = vmul.f32 %v919, 1.442695
    %v940 = vpow.pop %v939
    %v941 = vmul.f32 %v920, 1.442695
    %v942 = vpow.pop %v941
    %v943 = vmul.f32 %v921, 1.442695
    %v944 = vpow.pop %v943
    %v945 = vmul.f32 %v922, 1.442695
    %v946 = vpow.pop %v945
    %v947 = vmul.f32 %v923, 1.442695
    %v948 = vpow.pop %v947
    %v949 = vmul.f32 %v924, 1.442695
    %v950 = vpow.pop %v949
    %v951 = vmul.f32 %v925, 1.442695
    %v952 = vpow.pop %v951
    %v953 = vmul.f32 %v926, 1.442695
    %v954 = vpow.pop %v953
    %v955 = vmul.f32 %v927, 1.442695
    %v956 = vpow.pop %v955
    %v957 = vmul.f32 %v928, 1.442695
    %v958 = vpow.pop %v957
    %v959 = vmul.f32 %v929, 1.442695
    %v960 = vpow.pop %v959
    %v961 = vmul.f32 %v930, 1.442695
    %v962 = vpow.pop %v961
    %v963 = vsel %vm866, %v932, 0.0
    %964 = vadd.xlane.f32.xlu0 %v963
    %v965 = vpop.xlane.xlu0 %964
    %v966 = vsel %vm866, %v934, 0.0
    %967 = vadd.xlane.f32.xlu0 %v966
    %v968 = vpop.xlane.xlu0 %967
    %v969 = vsel %vm866, %v936, 0.0
    %970 = vadd.xlane.f32.xlu0 %v969
    %v971 = vpop.xlane.xlu0 %970
    %v972 = vsel %vm866, %v938, 0.0
    %973 = vadd.xlane.f32.xlu0 %v972
    %v974 = vpop.xlane.xlu0 %973
    %v975 = vsel %vm866, %v940, 0.0
    %976 = vadd.xlane.f32.xlu0 %v975
    %v977 = vpop.xlane.xlu0 %976
    %v978 = vsel %vm866, %v942, 0.0
    %979 = vadd.xlane.f32.xlu0 %v978
    %v980 = vpop.xlane.xlu0 %979
    %v981 = vsel %vm866, %v944, 0.0
    %982 = vadd.xlane.f32.xlu0 %v981
    %v983 = vpop.xlane.xlu0 %982
    %v984 = vsel %vm866, %v946, 0.0
    %985 = vadd.xlane.f32.xlu0 %v984
    %v986 = vpop.xlane.xlu0 %985
    %v987 = vsel %vm866, %v948, 0.0
    %988 = vadd.xlane.f32.xlu0 %v987
    %v989 = vpop.xlane.xlu0 %988
    %v990 = vsel %vm866, %v950, 0.0
    %991 = vadd.xlane.f32.xlu0 %v990
    %v992 = vpop.xlane.xlu0 %991
    %v993 = vsel %vm866, %v952, 0.0
    %994 = vadd.xlane.f32.xlu0 %v993
    %v995 = vpop.xlane.xlu0 %994
    %v996 = vsel %vm866, %v954, 0.0
    %997 = vadd.xlane.f32.xlu0 %v996
    %v998 = vpop.xlane.xlu0 %997
    %v999 = vsel %vm866, %v956, 0.0
    %1000 = vadd.xlane.f32.xlu0 %v999
    %v1001 = vpop.xlane.xlu0 %1000
    %v1002 = vsel %vm866, %v958, 0.0
    %1003 = vadd.xlane.f32.xlu0 %v1002
    %v1004 = vpop.xlane.xlu0 %1003
    %v1005 = vsel %vm866, %v960, 0.0
    %1006 = vadd.xlane.f32.xlu0 %v1005
    %v1007 = vpop.xlane.xlu0 %1006
    %v1008 = vsel %vm866, %v962, 0.0
    %1009 = vadd.xlane.f32.xlu0 %v1008
    %v1010 = vpop.xlane.xlu0 %1009
    %v1011 = vrcp.pop %v965
    %v1012 = vrcp.pop %v968
    %v1013 = vrcp.pop %v971
    %v1014 = vrcp.pop %v974
    %v1015 = vrcp.pop %v977
    %v1016 = vrcp.pop %v980
    %v1017 = vrcp.pop %v983
    %v1018 = vrcp.pop %v986
    %v1019 = vrcp.pop %v989
    %v1020 = vrcp.pop %v992
    %v1021 = vrcp.pop %v995
    %v1022 = vrcp.pop %v998
    %v1023 = vrcp.pop %v1001
    %v1024 = vrcp.pop %v1004
    %v1025 = vrcp.pop %v1007
    %v1026 = vrcp.pop %v1010
    %v1027 = vmul.f32 %v932, %v1011
    %v1028 = vmul.f32 %v934, %v1012
    %v1029 = vmul.f32 %v936, %v1013
    %v1030 = vmul.f32 %v938, %v1014
    %v1031 = vmul.f32 %v940, %v1015
    %v1032 = vmul.f32 %v942, %v1016
    %v1033 = vmul.f32 %v944, %v1017
    %v1034 = vmul.f32 %v946, %v1018
    %v1035 = vmul.f32 %v948, %v1019
    %v1036 = vmul.f32 %v950, %v1020
    %v1037 = vmul.f32 %v952, %v1021
    %v1038 = vmul.f32 %v954, %v1022
    %v1039 = vmul.f32 %v956, %v1023
    %v1040 = vmul.f32 %v958, %v1024
    %v1041 = vmul.f32 %v960, %v1025
    %v1042 = vmul.f32 %v962, %v1026
    %v1043 = vpack.c.bf16 %v1028, %v1027
    %v1044 = vpack.c.bf16 %v1030, %v1029
    %v1045 = vpack.c.bf16 %v1032, %v1031
    %v1046 = vpack.c.bf16 %v1034, %v1033
    %v1047 = vpack.c.bf16 %v1036, %v1035
    %v1048 = vpack.c.bf16 %v1038, %v1037
    %v1049 = vpack.c.bf16 %v1040, %v1039
    %v1050 = vpack.c.bf16 %v1042, %v1041
    %v1052 = vsel %vm866, %v1043, 0
    %1054 = vmatprep.subr.bf16.mxu0 0
    %1055 = vmatpush1.bf16.msra.mxu0 0
    %1056 = vmatprep.subr.bf16.mxu0 0
    %1057 = vmatpush1.bf16.msra.mxu0 0
    %1058 = vmatprep.subr.bf16.mxu0 0
    %1059 = vmatpush1.bf16.msra.mxu0 0
    %1060 = vmatprep.subr.bf16.mxu0 0
    %1061 = vmatpush1.bf16.msra.mxu0 0
    %1062 = vmatprep.subr.bf16.mxu0 0
    %1063 = vmatpush1.bf16.msra.mxu0 0
    %1064 = vmatprep.subr.bf16.mxu0 0
    %1065 = vmatpush1.bf16.msra.mxu0 0
    %1066 = vmatprep.subr.bf16.mxu0 0
    %1067 = vmatpush1.bf16.msra.mxu0 0
    %1068 = vmatprep.subr.bf16.mxu0 0
    %1069 = vmatpush1.bf16.msra.mxu0 %v430
    %1070 = vmatprep.subr.bf16.mxu0 0
    %1071 = vmatpush2.bf16.msra.mxu0 0
    %1072 = vmatprep.subr.bf16.mxu0 0
    %1073 = vmatpush2.bf16.msra.mxu0 0
    %1074 = vmatprep.subr.bf16.mxu0 0
    %1075 = vmatpush2.bf16.msra.mxu0 0
    %1076 = vmatprep.subr.bf16.mxu0 0
    %1077 = vmatpush2.bf16.msra.mxu0 0
    %1078 = vmatprep.subr.bf16.mxu0 0
    %1079 = vmatpush2.bf16.msra.mxu0 0
    %1080 = vmatprep.subr.bf16.mxu0 0
    %1081 = vmatpush2.bf16.msra.mxu0 0
    %1082 = vmatprep.subr.bf16.mxu0 0
    %1083 = vmatpush2.bf16.msra.mxu0 0
    %1084 = vmatprep.subr.bf16.mxu0 0
    %1085 = vmatpush2.bf16.msra.mxu0 0
    %1086 = vmatprep.mubr.bf16.mxu0 0
    %1087 = vmatmul.mubr.bf16.gmra.mxu0 %v1052
    %v1088 = vpop.f32.mrf.mxu0
    %v1089 = vadd.f32 0.0, %v1088
    %v1090 = vpop.f32.mrf.mxu0
    %v1091 = vpop.f32.mrf.mxu0
    %v1092 = vadd.f32 0.0, %v1091
    %v1093 = vpop.f32.mrf.mxu0
    %1094 = vdwg.mxu0
    %v1096 = vsel %vm866, %v1044, 0
    %1098 = vmatprep.subr.bf16.mxu0 0
    %1099 = vmatpush1.bf16.msra.mxu0 0
    %1100 = vmatprep.subr.bf16.mxu0 0
    %1101 = vmatpush1.bf16.msra.mxu0 0
    %1102 = vmatprep.subr.bf16.mxu0 0
    %1103 = vmatpush1.bf16.msra.mxu0 0
    %1104 = vmatprep.subr.bf16.mxu0 0
    %1105 = vmatpush1.bf16.msra.mxu0 0
    %1106 = vmatprep.subr.bf16.mxu0 0
    %1107 = vmatpush1.bf16.msra.mxu0 0
    %1108 = vmatprep.subr.bf16.mxu0 0
    %1109 = vmatpush1.bf16.msra.mxu0 0
    %1110 = vmatprep.subr.bf16.mxu0 0
    %1111 = vmatpush1.bf16.msra.mxu0 0
    %1112 = vmatprep.subr.bf16.mxu0 0
    %1113 = vmatpush1.bf16.msra.mxu0 %v431
    %1114 = vmatprep.subr.bf16.mxu0 0
    %1115 = vmatpush2.bf16.msra.mxu0 0
    %1116 = vmatprep.subr.bf16.mxu0 0
    %1117 = vmatpush2.bf16.msra.mxu0 0
    %1118 = vmatprep.subr.bf16.mxu0 0
    %1119 = vmatpush2.bf16.msra.mxu0 0
    %1120 = vmatprep.subr.bf16.mxu0 0
    %1121 = vmatpush2.bf16.msra.mxu0 0
    %1122 = vmatprep.subr.bf16.mxu0 0
    %1123 = vmatpush2.bf16.msra.mxu0 0
    %1124 = vmatprep.subr.bf16.mxu0 0
    %1125 = vmatpush2.bf16.msra.mxu0 0
    %1126 = vmatprep.subr.bf16.mxu0 0
    %1127 = vmatpush2.bf16.msra.mxu0 0
    %1128 = vmatprep.subr.bf16.mxu0 0
    %1129 = vmatpush2.bf16.msra.mxu0 0
    %1130 = vmatprep.mubr.bf16.mxu0 0
    %1131 = vmatmul.mubr.bf16.gmra.mxu0 %v1096
    %v1132 = vpop.f32.mrf.mxu0
    %v1133 = vadd.f32 0.0, %v1132
    %v1134 = vpop.f32.mrf.mxu0
    %v1135 = vpop.f32.mrf.mxu0
    %v1136 = vadd.f32 0.0, %v1135
    %v1137 = vpop.f32.mrf.mxu0
    %1138 = vdwg.mxu0
    %v1140 = vsel %vm866, %v1045, 0
    %1142 = vmatprep.subr.bf16.mxu0 0
    %1143 = vmatpush1.bf16.msra.mxu0 0
    %1144 = vmatprep.subr.bf16.mxu0 0
    %1145 = vmatpush1.bf16.msra.mxu0 0
    %1146 = vmatprep.subr.bf16.mxu0 0
    %1147 = vmatpush1.bf16.msra.mxu0 0
    %1148 = vmatprep.subr.bf16.mxu0 0
    %1149 = vmatpush1.bf16.msra.mxu0 0
    %1150 = vmatprep.subr.bf16.mxu0 0
    %1151 = vmatpush1.bf16.msra.mxu0 0
    %1152 = vmatprep.subr.bf16.mxu0 0
    %1153 = vmatpush1.bf16.msra.mxu0 0
    %1154 = vmatprep.subr.bf16.mxu0 0
    %1155 = vmatpush1.bf16.msra.mxu0 0
    %1156 = vmatprep.subr.bf16.mxu0 0
    %1157 = vmatpush1.bf16.msra.mxu0 %v463
    %1158 = vmatprep.subr.bf16.mxu0 0
    %1159 = vmatpush2.bf16.msra.mxu0 0
    %1160 = vmatprep.subr.bf16.mxu0 0
    %1161 = vmatpush2.bf16.msra.mxu0 0
    %1162 = vmatprep.subr.bf16.mxu0 0
    %1163 = vmatpush2.bf16.msra.mxu0 0
    %1164 = vmatprep.subr.bf16.mxu0 0
    %1165 = vmatpush2.bf16.msra.mxu0 0
    %1166 = vmatprep.subr.bf16.mxu0 0
    %1167 = vmatpush2.bf16.msra.mxu0 0
    %1168 = vmatprep.subr.bf16.mxu0 0
    %1169 = vmatpush2.bf16.msra.mxu0 0
    %1170 = vmatprep.subr.bf16.mxu0 0
    %1171 = vmatpush2.bf16.msra.mxu0 0
    %1172 = vmatprep.subr.bf16.mxu0 0
    %1173 = vmatpush2.bf16.msra.mxu0 0
    %1174 = vmatprep.mubr.bf16.mxu0 0
    %1175 = vmatmul.mubr.bf16.gmra.mxu0 %v1140
    %v1176 = vpop.f32.mrf.mxu0
    %v1177 = vadd.f32 0.0, %v1176
    %v1178 = vpop.f32.mrf.mxu0
    %v1179 = vpop.f32.mrf.mxu0
    %v1180 = vadd.f32 0.0, %v1179
    %v1181 = vpop.f32.mrf.mxu0
    %1182 = vdwg.mxu0
    %v1184 = vsel %vm866, %v1046, 0
    %1186 = vmatprep.subr.bf16.mxu0 0
    %1187 = vmatpush1.bf16.msra.mxu0 0
    %1188 = vmatprep.subr.bf16.mxu0 0
    %1189 = vmatpush1.bf16.msra.mxu0 0
    %1190 = vmatprep.subr.bf16.mxu0 0
    %1191 = vmatpush1.bf16.msra.mxu0 0
    %1192 = vmatprep.subr.bf16.mxu0 0
    %1193 = vmatpush1.bf16.msra.mxu0 0
    %1194 = vmatprep.subr.bf16.mxu0 0
    %1195 = vmatpush1.bf16.msra.mxu0 0
    %1196 = vmatprep.subr.bf16.mxu0 0
    %1197 = vmatpush1.bf16.msra.mxu0 0
    %1198 = vmatprep.subr.bf16.mxu0 0
    %1199 = vmatpush1.bf16.msra.mxu0 0
    %1200 = vmatprep.subr.bf16.mxu0 0
    %1201 = vmatpush1.bf16.msra.mxu0 %v465
    %1202 = vmatprep.subr.bf16.mxu0 0
    %1203 = vmatpush2.bf16.msra.mxu0 0
    %1204 = vmatprep.subr.bf16.mxu0 0
    %1205 = vmatpush2.bf16.msra.mxu0 0
    %1206 = vmatprep.subr.bf16.mxu0 0
    %1207 = vmatpush2.bf16.msra.mxu0 0
    %1208 = vmatprep.subr.bf16.mxu0 0
    %1209 = vmatpush2.bf16.msra.mxu0 0
    %1210 = vmatprep.subr.bf16.mxu0 0
    %1211 = vmatpush2.bf16.msra.mxu0 0
    %1212 = vmatprep.subr.bf16.mxu0 0
    %1213 = vmatpush2.bf16.msra.mxu0 0
    %1214 = vmatprep.subr.bf16.mxu0 0
    %1215 = vmatpush2.bf16.msra.mxu0 0
    %1216 = vmatprep.subr.bf16.mxu0 0
    %1217 = vmatpush2.bf16.msra.mxu0 0
    %1218 = vmatprep.mubr.bf16.mxu0 0
    %1219 = vmatmul.mubr.bf16.gmra.mxu0 %v1184
    %v1220 = vpop.f32.mrf.mxu0
    %v1221 = vadd.f32 0.0, %v1220
    %v1222 = vpop.f32.mrf.mxu0
    %v1223 = vpop.f32.mrf.mxu0
    %v1224 = vadd.f32 0.0, %v1223
    %v1225 = vpop.f32.mrf.mxu0
    %1226 = vdwg.mxu0
    %v1228 = vsel %vm866, %v1047, 0
    %1230 = vmatprep.subr.bf16.mxu0 0
    %1231 = vmatpush1.bf16.msra.mxu0 0
    %1232 = vmatprep.subr.bf16.mxu0 0
    %1233 = vmatpush1.bf16.msra.mxu0 0
    %1234 = vmatprep.subr.bf16.mxu0 0
    %1235 = vmatpush1.bf16.msra.mxu0 0
    %1236 = vmatprep.subr.bf16.mxu0 0
    %1237 = vmatpush1.bf16.msra.mxu0 0
    %1238 = vmatprep.subr.bf16.mxu0 0
    %1239 = vmatpush1.bf16.msra.mxu0 0
    %1240 = vmatprep.subr.bf16.mxu0 0
    %1241 = vmatpush1.bf16.msra.mxu0 0
    %1242 = vmatprep.subr.bf16.mxu0 0
    %1243 = vmatpush1.bf16.msra.mxu0 0
    %1244 = vmatprep.subr.bf16.mxu0 0
    %1245 = vmatpush1.bf16.msra.mxu0 %v469
    %1246 = vmatprep.subr.bf16.mxu0 0
    %1247 = vmatpush2.bf16.msra.mxu0 0
    %1248 = vmatprep.subr.bf16.mxu0 0
    %1249 = vmatpush2.bf16.msra.mxu0 0
    %1250 = vmatprep.subr.bf16.mxu0 0
    %1251 = vmatpush2.bf16.msra.mxu0 0
    %1252 = vmatprep.subr.bf16.mxu0 0
    %1253 = vmatpush2.bf16.msra.mxu0 0
    %1254 = vmatprep.subr.bf16.mxu0 0
    %1255 = vmatpush2.bf16.msra.mxu0 0
    %1256 = vmatprep.subr.bf16.mxu0 0
    %1257 = vmatpush2.bf16.msra.mxu0 0
    %1258 = vmatprep.subr.bf16.mxu0 0
    %1259 = vmatpush2.bf16.msra.mxu0 0
    %1260 = vmatprep.subr.bf16.mxu0 0
    %1261 = vmatpush2.bf16.msra.mxu0 0
    %1262 = vmatprep.mubr.bf16.mxu0 0
    %1263 = vmatmul.mubr.bf16.gmra.mxu0 %v1228
    %v1264 = vpop.f32.mrf.mxu0
    %v1265 = vadd.f32 0.0, %v1264
    %v1266 = vpop.f32.mrf.mxu0
    %v1267 = vpop.f32.mrf.mxu0
    %v1268 = vadd.f32 0.0, %v1267
    %v1269 = vpop.f32.mrf.mxu0
    %1270 = vdwg.mxu0
    %v1272 = vsel %vm866, %v1048, 0
    %1274 = vmatprep.subr.bf16.mxu0 0
    %1275 = vmatpush1.bf16.msra.mxu0 0
    %1276 = vmatprep.subr.bf16.mxu0 0
    %1277 = vmatpush1.bf16.msra.mxu0 0
    %1278 = vmatprep.subr.bf16.mxu0 0
    %1279 = vmatpush1.bf16.msra.mxu0 0
    %1280 = vmatprep.subr.bf16.mxu0 0
    %1281 = vmatpush1.bf16.msra.mxu0 0
    %1282 = vmatprep.subr.bf16.mxu0 0
    %1283 = vmatpush1.bf16.msra.mxu0 0
    %1284 = vmatprep.subr.bf16.mxu0 0
    %1285 = vmatpush1.bf16.msra.mxu0 0
    %1286 = vmatprep.subr.bf16.mxu0 0
    %1287 = vmatpush1.bf16.msra.mxu0 0
    %1288 = vmatprep.subr.bf16.mxu0 0
    %1289 = vmatpush1.bf16.msra.mxu0 %v471
    %1290 = vmatprep.subr.bf16.mxu0 0
    %1291 = vmatpush2.bf16.msra.mxu0 0
    %1292 = vmatprep.subr.bf16.mxu0 0
    %1293 = vmatpush2.bf16.msra.mxu0 0
    %1294 = vmatprep.subr.bf16.mxu0 0
    %1295 = vmatpush2.bf16.msra.mxu0 0
    %1296 = vmatprep.subr.bf16.mxu0 0
    %1297 = vmatpush2.bf16.msra.mxu0 0
    %1298 = vmatprep.subr.bf16.mxu0 0
    %1299 = vmatpush2.bf16.msra.mxu0 0
    %1300 = vmatprep.subr.bf16.mxu0 0
    %1301 = vmatpush2.bf16.msra.mxu0 0
    %1302 = vmatprep.subr.bf16.mxu0 0
    %1303 = vmatpush2.bf16.msra.mxu0 0
    %1304 = vmatprep.subr.bf16.mxu0 0
    %1305 = vmatpush2.bf16.msra.mxu0 0
    %1306 = vmatprep.mubr.bf16.mxu0 0
    %1307 = vmatmul.mubr.bf16.gmra.mxu0 %v1272
    %v1308 = vpop.f32.mrf.mxu0
    %v1309 = vadd.f32 0.0, %v1308
    %v1310 = vpop.f32.mrf.mxu0
    %v1311 = vpop.f32.mrf.mxu0
    %v1312 = vadd.f32 0.0, %v1311
    %v1313 = vpop.f32.mrf.mxu0
    %1314 = vdwg.mxu0
    %v1316 = vsel %vm866, %v1049, 0
    %1318 = vmatprep.subr.bf16.mxu0 0
    %1319 = vmatpush1.bf16.msra.mxu0 0
    %1320 = vmatprep.subr.bf16.mxu0 0
    %1321 = vmatpush1.bf16.msra.mxu0 0
    %1322 = vmatprep.subr.bf16.mxu0 0
    %1323 = vmatpush1.bf16.msra.mxu0 0
    %1324 = vmatprep.subr.bf16.mxu0 0
    %1325 = vmatpush1.bf16.msra.mxu0 0
    %1326 = vmatprep.subr.bf16.mxu0 0
    %1327 = vmatpush1.bf16.msra.mxu0 0
    %1328 = vmatprep.subr.bf16.mxu0 0
    %1329 = vmatpush1.bf16.msra.mxu0 0
    %1330 = vmatprep.subr.bf16.mxu0 0
    %1331 = vmatpush1.bf16.msra.mxu0 0
    %1332 = vmatprep.subr.bf16.mxu0 0
    %1333 = vmatpush1.bf16.msra.mxu0 %v475
    %1334 = vmatprep.subr.bf16.mxu0 0
    %1335 = vmatpush2.bf16.msra.mxu0 0
    %1336 = vmatprep.subr.bf16.mxu0 0
    %1337 = vmatpush2.bf16.msra.mxu0 0
    %1338 = vmatprep.subr.bf16.mxu0 0
    %1339 = vmatpush2.bf16.msra.mxu0 0
    %1340 = vmatprep.subr.bf16.mxu0 0
    %1341 = vmatpush2.bf16.msra.mxu0 0
    %1342 = vmatprep.subr.bf16.mxu0 0
    %1343 = vmatpush2.bf16.msra.mxu0 0
    %1344 = vmatprep.subr.bf16.mxu0 0
    %1345 = vmatpush2.bf16.msra.mxu0 0
    %1346 = vmatprep.subr.bf16.mxu0 0
    %1347 = vmatpush2.bf16.msra.mxu0 0
    %1348 = vmatprep.subr.bf16.mxu0 0
    %1349 = vmatpush2.bf16.msra.mxu0 0
    %1350 = vmatprep.mubr.bf16.mxu0 0
    %1351 = vmatmul.mubr.bf16.gmra.mxu0 %v1316
    %v1352 = vpop.f32.mrf.mxu0
    %v1353 = vadd.f32 0.0, %v1352
    %v1354 = vpop.f32.mrf.mxu0
    %v1355 = vpop.f32.mrf.mxu0
    %v1356 = vadd.f32 0.0, %v1355
    %v1357 = vpop.f32.mrf.mxu0
    %1358 = vdwg.mxu0
    %v1360 = vsel %vm866, %v1050, 0
    %1362 = vmatprep.subr.bf16.mxu0 0
    %1363 = vmatpush1.bf16.msra.mxu0 0
    %1364 = vmatprep.subr.bf16.mxu0 0
    %1365 = vmatpush1.bf16.msra.mxu0 0
    %1366 = vmatprep.subr.bf16.mxu0 0
    %1367 = vmatpush1.bf16.msra.mxu0 0
    %1368 = vmatprep.subr.bf16.mxu0 0
    %1369 = vmatpush1.bf16.msra.mxu0 0
    %1370 = vmatprep.subr.bf16.mxu0 0
    %1371 = vmatpush1.bf16.msra.mxu0 0
    %1372 = vmatprep.subr.bf16.mxu0 0
    %1373 = vmatpush1.bf16.msra.mxu0 0
    %1374 = vmatprep.subr.bf16.mxu0 0
    %1375 = vmatpush1.bf16.msra.mxu0 0
    %1376 = vmatprep.subr.bf16.mxu0 0
    %1377 = vmatpush1.bf16.msra.mxu0 %v477
    %1378 = vmatprep.subr.bf16.mxu0 0
    %1379 = vmatpush2.bf16.msra.mxu0 0
    %1380 = vmatprep.subr.bf16.mxu0 0
    %1381 = vmatpush2.bf16.msra.mxu0 0
    %1382 = vmatprep.subr.bf16.mxu0 0
    %1383 = vmatpush2.bf16.msra.mxu0 0
    %1384 = vmatprep.subr.bf16.mxu0 0
    %1385 = vmatpush2.bf16.msra.mxu0 0
    %1386 = vmatprep.subr.bf16.mxu0 0
    %1387 = vmatpush2.bf16.msra.mxu0 0
    %1388 = vmatprep.subr.bf16.mxu0 0
    %1389 = vmatpush2.bf16.msra.mxu0 0
    %1390 = vmatprep.subr.bf16.mxu0 0
    %1391 = vmatpush2.bf16.msra.mxu0 0
    %1392 = vmatprep.subr.bf16.mxu0 0
    %1393 = vmatpush2.bf16.msra.mxu0 0
    %1394 = vmatprep.mubr.bf16.mxu0 0
    %1395 = vmatmul.mubr.bf16.gmra.mxu0 %v1360
    %v1396 = vpop.f32.mrf.mxu0
    %v1397 = vadd.f32 0.0, %v1396
    %v1398 = vpop.f32.mrf.mxu0
    %v1399 = vpop.f32.mrf.mxu0
    %v1400 = vadd.f32 0.0, %v1399
    %v1401 = vpop.f32.mrf.mxu0
    %1402 = vdwg.mxu0
    %1407 = vrot.lane.b32.xlu0 %v1177, 32
    %v1408 = vpop.permute.xlu0 %1407
    %1409 = vrot.lane.b32.xlu0 %v1180, 32
    %v1410 = vpop.permute.xlu0 %1409
    %1411 = vrot.lane.b32.xlu0 %v1221, 32
    %v1412 = vpop.permute.xlu0 %1411
    %1413 = vrot.lane.b32.xlu0 %v1224, 32
    %v1414 = vpop.permute.xlu0 %1413
    %1423 = vrot.lane.b32.xlu0 %v1265, 64
    %v1424 = vpop.permute.xlu0 %1423
    %1425 = vrot.lane.b32.xlu0 %v1268, 64
    %v1426 = vpop.permute.xlu0 %1425
    %1427 = vrot.lane.b32.xlu0 %v1309, 64
    %v1428 = vpop.permute.xlu0 %1427
    %1429 = vrot.lane.b32.xlu0 %v1312, 64
    %v1430 = vpop.permute.xlu0 %1429
    %1439 = vrot.lane.b32.xlu0 %v1353, 96
    %v1440 = vpop.permute.xlu0 %1439
    %1441 = vrot.lane.b32.xlu0 %v1356, 96
    %v1442 = vpop.permute.xlu0 %1441
    %1443 = vrot.lane.b32.xlu0 %v1397, 96
    %v1444 = vpop.permute.xlu0 %1443
    %1445 = vrot.lane.b32.xlu0 %v1400, 96
    %v1446 = vpop.permute.xlu0 %1445
    %v1451 = vsel %vm489, %v1089, %v1408
    %v1452 = vsel %vm489, %v1092, %v1410
    %v1453 = vsel %vm489, %v1133, %v1412
    %v1454 = vsel %vm489, %v1136, %v1414
    %vm1455 = vcmask 523264
    %v1456 = vsel %vm1455, %v1451, %v1424
    %v1457 = vsel %vm1455, %v1452, %v1426
    %v1458 = vsel %vm1455, %v1453, %v1428
    %v1459 = vsel %vm1455, %v1454, %v1430
    %vm1460 = vcmask 785408
    %v1461 = vsel %vm1460, %v1456, %v1440
    %v1462 = vsel %vm1460, %v1457, %v1442
    %v1463 = vsel %vm1460, %v1458, %v1444
    %v1464 = vsel %vm1460, %v1459, %v1446
    %v1465 = vpack.c.bf16 %v1462, %v1461
    %v1466 = vpack.c.bf16 %v1464, %v1463
    %v1467 = vld [vmem:[#allocation7] sm:$0xf]
    %v1468 = vld [vmem:[#allocation7 + $0x4] sm:$0xf]
    %v1469 = vld [vmem:[#allocation7 + $0x8] sm:$0xf]
    %v1470 = vld [vmem:[#allocation7 + $0xc] sm:$0xf]
    %v1471 = vld [vmem:[#allocation7 + $0x10] sm:$0xf]
    %v1472 = vld [vmem:[#allocation7 + $0x14] sm:$0xf]
    %v1473 = vld [vmem:[#allocation7 + $0x18] sm:$0xf]
    %v1474 = vld [vmem:[#allocation7 + $0x1c] sm:$0xf]
    %v1475 = vld [vmem:[#allocation7 + $0x20] sm:$0xf]
    %v1476 = vld [vmem:[#allocation7 + $0x24] sm:$0xf]
    %v1477 = vld [vmem:[#allocation7 + $0x28] sm:$0xf]
    %v1478 = vld [vmem:[#allocation7 + $0x2c] sm:$0xf]
    %v1479 = vld [vmem:[#allocation7 + $0x30] sm:$0xf]
    %v1480 = vld [vmem:[#allocation7 + $0x34] sm:$0xf]
    %v1481 = vld [vmem:[#allocation7 + $0x38] sm:$0xf]
    %v1482 = vld [vmem:[#allocation7 + $0x3c] sm:$0xf]
    %v1499 = vunpack.c.l.b16 %v1467
    %v1500 = vunpack.c.l.b16 %v1468
    %v1501 = vunpack.c.l.b16 %v1469
    %v1502 = vunpack.c.l.b16 %v1470
    %v1503 = vunpack.c.l.b16 %v1471
    %v1504 = vunpack.c.l.b16 %v1472
    %v1505 = vunpack.c.l.b16 %v1473
    %v1506 = vunpack.c.l.b16 %v1474
    %v1507 = vunpack.c.l.b16 %v1475
    %v1508 = vunpack.c.l.b16 %v1476
    %v1509 = vunpack.c.l.b16 %v1477
    %v1510 = vunpack.c.l.b16 %v1478
    %v1511 = vunpack.c.l.b16 %v1479
    %v1512 = vunpack.c.l.b16 %v1480
    %v1513 = vunpack.c.l.b16 %v1481
    %v1514 = vunpack.c.l.b16 %v1482
    %v1515 = vpack.c.b16 %v1500, %v1499
    %v1516 = vpack.c.b16 %v1502, %v1501
    %v1517 = vpack.c.b16 %v1504, %v1503
    %v1518 = vpack.c.b16 %v1506, %v1505
    %v1519 = vpack.c.b16 %v1508, %v1507
    %v1520 = vpack.c.b16 %v1510, %v1509
    %v1521 = vpack.c.b16 %v1512, %v1511
    %v1522 = vpack.c.b16 %v1514, %v1513
    %1531 = vmatprep.subr.bf16.mxu0 0
    %1532 = vmatpush1.bf16.msra.mxu0 %v1522
    %1533 = vmatprep.subr.bf16.mxu0 0
    %1534 = vmatpush1.bf16.msra.mxu0 %v1521
    %1535 = vmatprep.subr.bf16.mxu0 0
    %1536 = vmatpush1.bf16.msra.mxu0 %v1520
    %1537 = vmatprep.subr.bf16.mxu0 0
    %1538 = vmatpush1.bf16.msra.mxu0 %v1519
    %1539 = vmatprep.subr.bf16.mxu0 0
    %1540 = vmatpush1.bf16.msra.mxu0 %v1518
    %1541 = vmatprep.subr.bf16.mxu0 0
    %1542 = vmatpush1.bf16.msra.mxu0 %v1517
    %1543 = vmatprep.subr.bf16.mxu0 0
    %1544 = vmatpush1.bf16.msra.mxu0 %v1516
    %1545 = vmatprep.subr.bf16.mxu0 0
    %1546 = vmatpush1.bf16.msra.mxu0 %v1515
    %1547 = vmatprep.subr.bf16.mxu0 0
    %1548 = vmatpush2.bf16.msra.mxu0 0
    %1549 = vmatprep.subr.bf16.mxu0 0
    %1550 = vmatpush2.bf16.msra.mxu0 0
    %1551 = vmatprep.subr.bf16.mxu0 0
    %1552 = vmatpush2.bf16.msra.mxu0 0
    %1553 = vmatprep.subr.bf16.mxu0 0
    %1554 = vmatpush2.bf16.msra.mxu0 0
    %1555 = vmatprep.subr.bf16.mxu0 0
    %1556 = vmatpush2.bf16.msra.mxu0 0
    %1557 = vmatprep.subr.bf16.mxu0 0
    %1558 = vmatpush2.bf16.msra.mxu0 0
    %1559 = vmatprep.subr.bf16.mxu0 0
    %1560 = vmatpush2.bf16.msra.mxu0 0
    %1561 = vmatprep.subr.bf16.mxu0 0
    %1562 = vmatpush2.bf16.msra.mxu0 0
    %1563 = vmatprep.mubr.bf16.mxu0 0
    %1564 = vmatmul.mubr.bf16.gmra.mxu0 %v1465
    %v1565 = vpop.f32.mrf.mxu0
    %v1566 = vadd.f32 0.0, %v1565
    %v1567 = vpop.f32.mrf.mxu0
    %v1568 = vpop.f32.mrf.mxu0
    %v1569 = vadd.f32 0.0, %v1568
    %v1570 = vpop.f32.mrf.mxu0
    %1571 = vmatprep.mubr.bf16.mxu0 0
    %1572 = vmatmul.mubr.bf16.gmra.mxu0 %v1466
    %v1573 = vpop.f32.mrf.mxu0
    %v1574 = vadd.f32 0.0, %v1573
    %v1575 = vpop.f32.mrf.mxu0
    %v1576 = vpop.f32.mrf.mxu0
    %v1577 = vadd.f32 0.0, %v1576
    %v1578 = vpop.f32.mrf.mxu0
    %1579 = vdwg.mxu0
    %v1580 = vadd.f32 %v102, %v1566
    %v1581 = vadd.f32 %v103, %v1569
    %v1582 = vadd.f32 %v104, %v1574
    %v1583 = vadd.f32 %v105, %v1577
    %v1584 = vld [vmem:[%s4] sm:$0x1]
    %1585 = vadd.xlane.f32.xlu0 %v1580
    %v1586 = vpop.xlane.xlu0 %1585
    %1587 = vadd.xlane.f32.xlu0 %v1581
    %v1588 = vpop.xlane.xlu0 %1587
    %1589 = vadd.xlane.f32.xlu0 %v1582
    %v1590 = vpop.xlane.xlu0 %1589
    %1591 = vadd.xlane.f32.xlu0 %v1583
    %v1592 = vpop.xlane.xlu0 %1591
    %v1593 = vmul.f32 %v1586, %v115
    %v1594 = vmul.f32 %v1588, %v115
    %v1595 = vmul.f32 %v1590, %v115
    %v1596 = vmul.f32 %v1592, %v115
    %v1597 = vsub.f32 %v1580, %v1593
    %v1598 = vsub.f32 %v1581, %v1594
    %v1599 = vsub.f32 %v1582, %v1595
    %v1600 = vsub.f32 %v1583, %v1596
    %v1601 = vmul.f32 %v1597, %v1597
    %v1602 = vmul.f32 %v1598, %v1598
    %v1603 = vmul.f32 %v1599, %v1599
    %v1604 = vmul.f32 %v1600, %v1600
    %1605 = vadd.xlane.f32.xlu0 %v1601
    %v1606 = vpop.xlane.xlu0 %1605
    %1607 = vadd.xlane.f32.xlu0 %v1602
    %v1608 = vpop.xlane.xlu0 %1607
    %1609 = vadd.xlane.f32.xlu0 %v1603
    %v1610 = vpop.xlane.xlu0 %1609
    %1611 = vadd.xlane.f32.xlu0 %v1604
    %v1612 = vpop.xlane.xlu0 %1611
    %v1613 = vmul.f32 %v1606, %v115
    %v1614 = vmul.f32 %v1608, %v115
    %v1615 = vmul.f32 %v1610, %v115
    %v1616 = vmul.f32 %v1612, %v115
    %v1617 = vadd.f32 %v1613, 1e-05
    %v1618 = vadd.f32 %v1614, 1e-05
    %v1619 = vadd.f32 %v1615, 1e-05
    %v1620 = vadd.f32 %v1616, 1e-05
    %v1621 = vrsqrt.pop %v1617
    %v1622 = vrsqrt.pop %v1618
    %v1623 = vrsqrt.pop %v1619
    %v1624 = vrsqrt.pop %v1620
    %v1625 = vmul.f32 %v1597, %v1621
    %v1626 = vmul.f32 %v1598, %v1622
    %v1627 = vmul.f32 %v1599, %v1623
    %v1628 = vmul.f32 %v1600, %v1624
    %v1630 = vlaneseq
    %v1631 = vshrl.u32 %v1630, 7
    %v1632 = vsub.s32 0, %v1631
    %v1633 = vrot.slane %v1584, %v1632
    %v1635 = vmul.f32 %v1625, %v1633
    %v1636 = vmul.f32 %v1626, %v1633
    %v1637 = vmul.f32 %v1627, %v1633
    %v1638 = vmul.f32 %v1628, %v1633
    %v1639 = vpack.c.bf16 %v1636, %v1635
    %v1640 = vpack.c.bf16 %v1638, %v1637
    %v1641 = vld [vmem:[#allocation8] sm:$0xff]
    %v1642 = vld [vmem:[#allocation8 + $0x8] sm:$0xff]
    %v1643 = vld [vmem:[#allocation8 + $0x10] sm:$0xff]
    %v1644 = vld [vmem:[#allocation8 + $0x18] sm:$0xff]
    %v1645 = vld [vmem:[#allocation8 + $0x20] sm:$0xff]
    %v1646 = vld [vmem:[#allocation8 + $0x28] sm:$0xff]
    %v1647 = vld [vmem:[#allocation8 + $0x30] sm:$0xff]
    %v1648 = vld [vmem:[#allocation8 + $0x38] sm:$0xff]
    %v1649 = vld [vmem:[#allocation8 + $0x40] sm:$0xff]
    %v1650 = vld [vmem:[#allocation8 + $0x48] sm:$0xff]
    %v1651 = vld [vmem:[#allocation8 + $0x50] sm:$0xff]
    %v1652 = vld [vmem:[#allocation8 + $0x58] sm:$0xff]
    %v1653 = vld [vmem:[#allocation8 + $0x60] sm:$0xff]
    %v1654 = vld [vmem:[#allocation8 + $0x68] sm:$0xff]
    %v1655 = vld [vmem:[#allocation8 + $0x70] sm:$0xff]
    %v1656 = vld [vmem:[#allocation8 + $0x78] sm:$0xff]
    %v1657 = vld [vmem:[#allocation8 + $0x80] sm:$0xff]
    %v1658 = vld [vmem:[#allocation8 + $0x88] sm:$0xff]
    %v1659 = vld [vmem:[#allocation8 + $0x90] sm:$0xff]
    %v1660 = vld [vmem:[#allocation8 + $0x98] sm:$0xff]
    %v1661 = vld [vmem:[#allocation8 + $0xa0] sm:$0xff]
    %v1662 = vld [vmem:[#allocation8 + $0xa8] sm:$0xff]
    %v1663 = vld [vmem:[#allocation8 + $0xb0] sm:$0xff]
    %v1664 = vld [vmem:[#allocation8 + $0xb8] sm:$0xff]
    %v1665 = vld [vmem:[#allocation8 + $0xc0] sm:$0xff]
    %v1666 = vld [vmem:[#allocation8 + $0xc8] sm:$0xff]
    %v1667 = vld [vmem:[#allocation8 + $0xd0] sm:$0xff]
    %v1668 = vld [vmem:[#allocation8 + $0xd8] sm:$0xff]
    %v1669 = vld [vmem:[#allocation8 + $0xe0] sm:$0xff]
    %v1670 = vld [vmem:[#allocation8 + $0xe8] sm:$0xff]
    %v1671 = vld [vmem:[#allocation8 + $0xf0] sm:$0xff]
    %v1672 = vld [vmem:[#allocation8 + $0xf8] sm:$0xff]
    %v1673 = vld [vmem:[%s6] sm:$0xf]
    %v1675 = vlaneseq
    %v1676 = vshrl.u32 %v1675, 7
    %v1677 = vsub.s32 0, %v1676
    %v1678 = vrot.slane %v1673, %v1677
    %v1679 = vlaneseq
    %v1680 = vshrl.u32 %v1679, 7
    %v1681 = vsub.s32 1, %v1680
    %v1682 = vrot.slane %v1673, %v1681
    %v1683 = vlaneseq
    %v1684 = vshrl.u32 %v1683, 7
    %v1685 = vsub.s32 2, %v1684
    %v1686 = vrot.slane %v1673, %v1685
    %v1687 = vlaneseq
    %v1688 = vshrl.u32 %v1687, 7
    %v1689 = vsub.s32 3, %v1688
    %v1690 = vrot.slane %v1673, %v1689
    %v1727 = vunpack.c.l.b16 %v1641
    %v1728 = vunpack.c.h.b16 %v1641
    %v1729 = vunpack.c.l.b16 %v1642
    %v1730 = vunpack.c.h.b16 %v1642
    %v1731 = vunpack.c.l.b16 %v1643
    %v1732 = vunpack.c.h.b16 %v1643
    %v1733 = vunpack.c.l.b16 %v1644
    %v1734 = vunpack.c.h.b16 %v1644
    %v1735 = vunpack.c.l.b16 %v1645
    %v1736 = vunpack.c.h.b16 %v1645
    %v1737 = vunpack.c.l.b16 %v1646
    %v1738 = vunpack.c.h.b16 %v1646
    %v1739 = vunpack.c.l.b16 %v1647
    %v1740 = vunpack.c.h.b16 %v1647
    %v1741 = vunpack.c.l.b16 %v1648
    %v1742 = vunpack.c.h.b16 %v1648
    %v1743 = vunpack.c.l.b16 %v1649
    %v1744 = vunpack.c.h.b16 %v1649
    %v1745 = vunpack.c.l.b16 %v1650
    %v1746 = vunpack.c.h.b16 %v1650
    %v1747 = vunpack.c.l.b16 %v1651
    %v1748 = vunpack.c.h.b16 %v1651
    %v1749 = vunpack.c.l.b16 %v1652
    %v1750 = vunpack.c.h.b16 %v1652
    %v1751 = vunpack.c.l.b16 %v1653
    %v1752 = vunpack.c.h.b16 %v1653
    %v1753 = vunpack.c.l.b16 %v1654
    %v1754 = vunpack.c.h.b16 %v1654
    %v1755 = vunpack.c.l.b16 %v1655
    %v1756 = vunpack.c.h.b16 %v1655
    %v1757 = vunpack.c.l.b16 %v1656
    %v1758 = vunpack.c.h.b16 %v1656
    %v1759 = vunpack.c.l.b16 %v1657
    %v1760 = vunpack.c.h.b16 %v1657
    %v1761 = vunpack.c.l.b16 %v1658
    %v1762 = vunpack.c.h.b16 %v1658
    %v1763 = vunpack.c.l.b16 %v1659
    %v1764 = vunpack.c.h.b16 %v1659
    %v1765 = vunpack.c.l.b16 %v1660
    %v1766 = vunpack.c.h.b16 %v1660
    %v1767 = vunpack.c.l.b16 %v1661
    %v1768 = vunpack.c.h.b16 %v1661
    %v1769 = vunpack.c.l.b16 %v1662
    %v1770 = vunpack.c.h.b16 %v1662
    %v1771 = vunpack.c.l.b16 %v1663
    %v1772 = vunpack.c.h.b16 %v1663
    %v1773 = vunpack.c.l.b16 %v1664
    %v1774 = vunpack.c.h.b16 %v1664
    %v1775 = vunpack.c.l.b16 %v1665
    %v1776 = vunpack.c.h.b16 %v1665
    %v1777 = vunpack.c.l.b16 %v1666
    %v1778 = vunpack.c.h.b16 %v1666
    %v1779 = vunpack.c.l.b16 %v1667
    %v1780 = vunpack.c.h.b16 %v1667
    %v1781 = vunpack.c.l.b16 %v1668
    %v1782 = vunpack.c.h.b16 %v1668
    %v1783 = vunpack.c.l.b16 %v1669
    %v1784 = vunpack.c.h.b16 %v1669
    %v1785 = vunpack.c.l.b16 %v1670
    %v1786 = vunpack.c.h.b16 %v1670
    %v1787 = vunpack.c.l.b16 %v1671
    %v1788 = vunpack.c.h.b16 %v1671
    %v1789 = vunpack.c.l.b16 %v1672
    %v1790 = vunpack.c.h.b16 %v1672
    %v1791 = vpack.c.b16 %v1731, %v1727
    %v1792 = vpack.c.b16 %v1732, %v1728
    %v1793 = vpack.c.b16 %v1733, %v1729
    %v1794 = vpack.c.b16 %v1734, %v1730
    %v1795 = vpack.c.b16 %v1739, %v1735
    %v1796 = vpack.c.b16 %v1740, %v1736
    %v1797 = vpack.c.b16 %v1741, %v1737
    %v1798 = vpack.c.b16 %v1742, %v1738
    %v1799 = vpack.c.b16 %v1747, %v1743
    %v1800 = vpack.c.b16 %v1748, %v1744
    %v1801 = vpack.c.b16 %v1749, %v1745
    %v1802 = vpack.c.b16 %v1750, %v1746
    %v1803 = vpack.c.b16 %v1755, %v1751
    %v1804 = vpack.c.b16 %v1756, %v1752
    %v1805 = vpack.c.b16 %v1757, %v1753
    %v1806 = vpack.c.b16 %v1758, %v1754
    %v1807 = vpack.c.b16 %v1763, %v1759
    %v1808 = vpack.c.b16 %v1764, %v1760
    %v1809 = vpack.c.b16 %v1765, %v1761
    %v1810 = vpack.c.b16 %v1766, %v1762
    %v1811 = vpack.c.b16 %v1771, %v1767
    %v1812 = vpack.c.b16 %v1772, %v1768
    %v1813 = vpack.c.b16 %v1773, %v1769
    %v1814 = vpack.c.b16 %v1774, %v1770
    %v1815 = vpack.c.b16 %v1779, %v1775
    %v1816 = vpack.c.b16 %v1780, %v1776
    %v1817 = vpack.c.b16 %v1781, %v1777
    %v1818 = vpack.c.b16 %v1782, %v1778
    %v1819 = vpack.c.b16 %v1787, %v1783
    %v1820 = vpack.c.b16 %v1788, %v1784
    %v1821 = vpack.c.b16 %v1789, %v1785
    %v1822 = vpack.c.b16 %v1790, %v1786
    %1855 = vmatprep.subr.bf16.mxu0 %v1820
    %1856 = vmatpush1.bf16.msra.mxu0 %v1819
    %1857 = vmatprep.subr.bf16.mxu0 %v1816
    %1858 = vmatpush1.bf16.msra.mxu0 %v1815
    %1859 = vmatprep.subr.bf16.mxu0 %v1812
    %1860 = vmatpush1.bf16.msra.mxu0 %v1811
    %1861 = vmatprep.subr.bf16.mxu0 %v1808
    %1862 = vmatpush1.bf16.msra.mxu0 %v1807
    %1863 = vmatprep.subr.bf16.mxu0 %v1804
    %1864 = vmatpush1.bf16.msra.mxu0 %v1803
    %1865 = vmatprep.subr.bf16.mxu0 %v1800
    %1866 = vmatpush1.bf16.msra.mxu0 %v1799
    %1867 = vmatprep.subr.bf16.mxu0 %v1796
    %1868 = vmatpush1.bf16.msra.mxu0 %v1795
    %1869 = vmatprep.subr.bf16.mxu0 %v1792
    %1870 = vmatpush1.bf16.msra.mxu0 %v1791
    %1871 = vmatprep.subr.bf16.mxu0 0
    %1872 = vmatpush2.bf16.msra.mxu0 0
    %1873 = vmatprep.subr.bf16.mxu0 0
    %1874 = vmatpush2.bf16.msra.mxu0 0
    %1875 = vmatprep.subr.bf16.mxu0 0
    %1876 = vmatpush2.bf16.msra.mxu0 0
    %1877 = vmatprep.subr.bf16.mxu0 0
    %1878 = vmatpush2.bf16.msra.mxu0 0
    %1879 = vmatprep.subr.bf16.mxu0 0
    %1880 = vmatpush2.bf16.msra.mxu0 0
    %1881 = vmatprep.subr.bf16.mxu0 0
    %1882 = vmatpush2.bf16.msra.mxu0 0
    %1883 = vmatprep.subr.bf16.mxu0 0
    %1884 = vmatpush2.bf16.msra.mxu0 0
    %1885 = vmatprep.subr.bf16.mxu0 0
    %1886 = vmatpush2.bf16.msra.mxu0 0
    %1887 = vmatprep.mubr.bf16.mxu0 0
    %1888 = vmatmul.mubr.bf16.gmra.mxu0 %v1639
    %v1889 = vpop.f32.mrf.mxu0
    %v1890 = vadd.f32 %v1678, %v1889
    %v1891 = vpop.f32.mrf.mxu0
    %v1892 = vadd.f32 %v1682, %v1891
    %v1893 = vpop.f32.mrf.mxu0
    %v1894 = vadd.f32 %v1678, %v1893
    %v1895 = vpop.f32.mrf.mxu0
    %v1896 = vadd.f32 %v1682, %v1895
    %1897 = vmatprep.mubr.bf16.mxu0 0
    %1898 = vmatmul.mubr.bf16.gmra.mxu0 %v1640
    %v1899 = vpop.f32.mrf.mxu0
    %v1900 = vadd.f32 %v1678, %v1899
    %v1901 = vpop.f32.mrf.mxu0
    %v1902 = vadd.f32 %v1682, %v1901
    %v1903 = vpop.f32.mrf.mxu0
    %v1904 = vadd.f32 %v1678, %v1903
    %v1905 = vpop.f32.mrf.mxu0
    %v1906 = vadd.f32 %v1682, %v1905
    %1907 = vdwg.mxu0
    %1908 = vmatprep.subr.bf16.mxu0 %v1822
    %1909 = vmatpush1.bf16.msra.mxu0 %v1821
    %1910 = vmatprep.subr.bf16.mxu0 %v1818
    %1911 = vmatpush1.bf16.msra.mxu0 %v1817
    %1912 = vmatprep.subr.bf16.mxu0 %v1814
    %1913 = vmatpush1.bf16.msra.mxu0 %v1813
    %1914 = vmatprep.subr.bf16.mxu0 %v1810
    %1915 = vmatpush1.bf16.msra.mxu0 %v1809
    %1916 = vmatprep.subr.bf16.mxu0 %v1806
    %1917 = vmatpush1.bf16.msra.mxu0 %v1805
    %1918 = vmatprep.subr.bf16.mxu0 %v1802
    %1919 = vmatpush1.bf16.msra.mxu0 %v1801
    %1920 = vmatprep.subr.bf16.mxu0 %v1798
    %1921 = vmatpush1.bf16.msra.mxu0 %v1797
    %1922 = vmatprep.subr.bf16.mxu0 %v1794
    %1923 = vmatpush1.bf16.msra.mxu0 %v1793
    %1924 = vmatprep.subr.bf16.mxu0 0
    %1925 = vmatpush2.bf16.msra.mxu0 0
    %1926 = vmatprep.subr.bf16.mxu0 0
    %1927 = vmatpush2.bf16.msra.mxu0 0
    %1928 = vmatprep.subr.bf16.mxu0 0
    %1929 = vmatpush2.bf16.msra.mxu0 0
    %1930 = vmatprep.subr.bf16.mxu0 0
    %1931 = vmatpush2.bf16.msra.mxu0 0
    %1932 = vmatprep.subr.bf16.mxu0 0
    %1933 = vmatpush2.bf16.msra.mxu0 0
    %1934 = vmatprep.subr.bf16.mxu0 0
    %1935 = vmatpush2.bf16.msra.mxu0 0
    %1936 = vmatprep.subr.bf16.mxu0 0
    %1937 = vmatpush2.bf16.msra.mxu0 0
    %1938 = vmatprep.subr.bf16.mxu0 0
    %1939 = vmatpush2.bf16.msra.mxu0 0
    %1940 = vmatprep.mubr.bf16.mxu0 0
    %1941 = vmatmul.mubr.bf16.gmra.mxu0 %v1639
    %v1942 = vpop.f32.mrf.mxu0
    %v1943 = vadd.f32 %v1686, %v1942
    %v1944 = vpop.f32.mrf.mxu0
    %v1945 = vadd.f32 %v1690, %v1944
    %v1946 = vpop.f32.mrf.mxu0
    %v1947 = vadd.f32 %v1686, %v1946
    %v1948 = vpop.f32.mrf.mxu0
    %v1949 = vadd.f32 %v1690, %v1948
    %1950 = vmatprep.mubr.bf16.mxu0 0
    %1951 = vmatmul.mubr.bf16.gmra.mxu0 %v1640
    %v1952 = vpop.f32.mrf.mxu0
    %v1953 = vadd.f32 %v1686, %v1952
    %v1954 = vpop.f32.mrf.mxu0
    %v1955 = vadd.f32 %v1690, %v1954
    %v1956 = vpop.f32.mrf.mxu0
    %v1957 = vadd.f32 %v1686, %v1956
    %v1958 = vpop.f32.mrf.mxu0
    %v1959 = vadd.f32 %v1690, %v1958
    %1960 = vdwg.mxu0
    %v1961 = vmax.f32 %v1890, 0.0
    %v1962 = vmax.f32 %v1892, 0.0
    %v1963 = vmax.f32 %v1943, 0.0
    %v1964 = vmax.f32 %v1945, 0.0
    %v1965 = vmax.f32 %v1894, 0.0
    %v1966 = vmax.f32 %v1896, 0.0
    %v1967 = vmax.f32 %v1947, 0.0
    %v1968 = vmax.f32 %v1949, 0.0
    %v1969 = vmax.f32 %v1900, 0.0
    %v1970 = vmax.f32 %v1902, 0.0
    %v1971 = vmax.f32 %v1953, 0.0
    %v1972 = vmax.f32 %v1955, 0.0
    %v1973 = vmax.f32 %v1904, 0.0
    %v1974 = vmax.f32 %v1906, 0.0
    %v1975 = vmax.f32 %v1957, 0.0
    %v1976 = vmax.f32 %v1959, 0.0
    %v1977 = vpack.c.bf16 %v1965, %v1961
    %v1978 = vpack.c.bf16 %v1966, %v1962
    %v1979 = vpack.c.bf16 %v1967, %v1963
    %v1980 = vpack.c.bf16 %v1968, %v1964
    %v1981 = vpack.c.bf16 %v1973, %v1969
    %v1982 = vpack.c.bf16 %v1974, %v1970
    %v1983 = vpack.c.bf16 %v1975, %v1971
    %v1984 = vpack.c.bf16 %v1976, %v1972
    %v1985 = vld [vmem:[#allocation10] sm:$0xf]
    %v1986 = vld [vmem:[#allocation10 + $0x4] sm:$0xf]
    %v1987 = vld [vmem:[#allocation10 + $0x8] sm:$0xf]
    %v1988 = vld [vmem:[#allocation10 + $0xc] sm:$0xf]
    %v1989 = vld [vmem:[#allocation10 + $0x10] sm:$0xf]
    %v1990 = vld [vmem:[#allocation10 + $0x14] sm:$0xf]
    %v1991 = vld [vmem:[#allocation10 + $0x18] sm:$0xf]
    %v1992 = vld [vmem:[#allocation10 + $0x1c] sm:$0xf]
    %v1993 = vld [vmem:[#allocation10 + $0x20] sm:$0xf]
    %v1994 = vld [vmem:[#allocation10 + $0x24] sm:$0xf]
    %v1995 = vld [vmem:[#allocation10 + $0x28] sm:$0xf]
    %v1996 = vld [vmem:[#allocation10 + $0x2c] sm:$0xf]
    %v1997 = vld [vmem:[#allocation10 + $0x30] sm:$0xf]
    %v1998 = vld [vmem:[#allocation10 + $0x34] sm:$0xf]
    %v1999 = vld [vmem:[#allocation10 + $0x38] sm:$0xf]
    %v2000 = vld [vmem:[#allocation10 + $0x3c] sm:$0xf]
    %v2001 = vld [vmem:[#allocation10 + $0x40] sm:$0xf]
    %v2002 = vld [vmem:[#allocation10 + $0x44] sm:$0xf]
    %v2003 = vld [vmem:[#allocation10 + $0x48] sm:$0xf]
    %v2004 = vld [vmem:[#allocation10 + $0x4c] sm:$0xf]
    %v2005 = vld [vmem:[#allocation10 + $0x50] sm:$0xf]
    %v2006 = vld [vmem:[#allocation10 + $0x54] sm:$0xf]
    %v2007 = vld [vmem:[#allocation10 + $0x58] sm:$0xf]
    %v2008 = vld [vmem:[#allocation10 + $0x5c] sm:$0xf]
    %v2009 = vld [vmem:[#allocation10 + $0x60] sm:$0xf]
    %v2010 = vld [vmem:[#allocation10 + $0x64] sm:$0xf]
    %v2011 = vld [vmem:[#allocation10 + $0x68] sm:$0xf]
    %v2012 = vld [vmem:[#allocation10 + $0x6c] sm:$0xf]
    %v2013 = vld [vmem:[#allocation10 + $0x70] sm:$0xf]
    %v2014 = vld [vmem:[#allocation10 + $0x74] sm:$0xf]
    %v2015 = vld [vmem:[#allocation10 + $0x78] sm:$0xf]
    %v2016 = vld [vmem:[#allocation10 + $0x7c] sm:$0xf]
    %v2017 = vld [vmem:[#allocation10 + $0x80] sm:$0xf]
    %v2018 = vld [vmem:[#allocation10 + $0x84] sm:$0xf]
    %v2019 = vld [vmem:[#allocation10 + $0x88] sm:$0xf]
    %v2020 = vld [vmem:[#allocation10 + $0x8c] sm:$0xf]
    %v2021 = vld [vmem:[#allocation10 + $0x90] sm:$0xf]
    %v2022 = vld [vmem:[#allocation10 + $0x94] sm:$0xf]
    %v2023 = vld [vmem:[#allocation10 + $0x98] sm:$0xf]
    %v2024 = vld [vmem:[#allocation10 + $0x9c] sm:$0xf]
    %v2025 = vld [vmem:[#allocation10 + $0xa0] sm:$0xf]
    %v2026 = vld [vmem:[#allocation10 + $0xa4] sm:$0xf]
    %v2027 = vld [vmem:[#allocation10 + $0xa8] sm:$0xf]
    %v2028 = vld [vmem:[#allocation10 + $0xac] sm:$0xf]
    %v2029 = vld [vmem:[#allocation10 + $0xb0] sm:$0xf]
    %v2030 = vld [vmem:[#allocation10 + $0xb4] sm:$0xf]
    %v2031 = vld [vmem:[#allocation10 + $0xb8] sm:$0xf]
    %v2032 = vld [vmem:[#allocation10 + $0xbc] sm:$0xf]
    %v2033 = vld [vmem:[#allocation10 + $0xc0] sm:$0xf]
    %v2034 = vld [vmem:[#allocation10 + $0xc4] sm:$0xf]
    %v2035 = vld [vmem:[#allocation10 + $0xc8] sm:$0xf]
    %v2036 = vld [vmem:[#allocation10 + $0xcc] sm:$0xf]
    %v2037 = vld [vmem:[#allocation10 + $0xd0] sm:$0xf]
    %v2038 = vld [vmem:[#allocation10 + $0xd4] sm:$0xf]
    %v2039 = vld [vmem:[#allocation10 + $0xd8] sm:$0xf]
    %v2040 = vld [vmem:[#allocation10 + $0xdc] sm:$0xf]
    %v2041 = vld [vmem:[#allocation10 + $0xe0] sm:$0xf]
    %v2042 = vld [vmem:[#allocation10 + $0xe4] sm:$0xf]
    %v2043 = vld [vmem:[#allocation10 + $0xe8] sm:$0xf]
    %v2044 = vld [vmem:[#allocation10 + $0xec] sm:$0xf]
    %v2045 = vld [vmem:[#allocation10 + $0xf0] sm:$0xf]
    %v2046 = vld [vmem:[#allocation10 + $0xf4] sm:$0xf]
    %v2047 = vld [vmem:[#allocation10 + $0xf8] sm:$0xf]
    %v2048 = vld [vmem:[#allocation10 + $0xfc] sm:$0xf]
    %v2049 = vld [vmem:[%s8] sm:$0x1]
    %v2051 = vlaneseq
    %v2052 = vshrl.u32 %v2051, 7
    %v2053 = vsub.s32 0, %v2052
    %v2054 = vrot.slane %v2049, %v2053
    %v2120 = vunpack.c.l.b16 %v1985
    %v2121 = vunpack.c.l.b16 %v1986
    %v2122 = vunpack.c.l.b16 %v1987
    %v2123 = vunpack.c.l.b16 %v1988
    %v2124 = vunpack.c.l.b16 %v1989
    %v2125 = vunpack.c.l.b16 %v1990
    %v2126 = vunpack.c.l.b16 %v1991
    %v2127 = vunpack.c.l.b16 %v1992
    %v2128 = vunpack.c.l.b16 %v1993
    %v2129 = vunpack.c.l.b16 %v1994
    %v2130 = vunpack.c.l.b16 %v1995
    %v2131 = vunpack.c.l.b16 %v1996
    %v2132 = vunpack.c.l.b16 %v1997
    %v2133 = vunpack.c.l.b16 %v1998
    %v2134 = vunpack.c.l.b16 %v1999
    %v2135 = vunpack.c.l.b16 %v2000
    %v2136 = vunpack.c.l.b16 %v2001
    %v2137 = vunpack.c.l.b16 %v2002
    %v2138 = vunpack.c.l.b16 %v2003
    %v2139 = vunpack.c.l.b16 %v2004
    %v2140 = vunpack.c.l.b16 %v2005
    %v2141 = vunpack.c.l.b16 %v2006
    %v2142 = vunpack.c.l.b16 %v2007
    %v2143 = vunpack.c.l.b16 %v2008
    %v2144 = vunpack.c.l.b16 %v2009
    %v2145 = vunpack.c.l.b16 %v2010
    %v2146 = vunpack.c.l.b16 %v2011
    %v2147 = vunpack.c.l.b16 %v2012
    %v2148 = vunpack.c.l.b16 %v2013
    %v2149 = vunpack.c.l.b16 %v2014
    %v2150 = vunpack.c.l.b16 %v2015
    %v2151 = vunpack.c.l.b16 %v2016
    %v2152 = vunpack.c.l.b16 %v2017
    %v2153 = vunpack.c.l.b16 %v2018
    %v2154 = vunpack.c.l.b16 %v2019
    %v2155 = vunpack.c.l.b16 %v2020
    %v2156 = vunpack.c.l.b16 %v2021
    %v2157 = vunpack.c.l.b16 %v2022
    %v2158 = vunpack.c.l.b16 %v2023
    %v2159 = vunpack.c.l.b16 %v2024
    %v2160 = vunpack.c.l.b16 %v2025
    %v2161 = vunpack.c.l.b16 %v2026
    %v2162 = vunpack.c.l.b16 %v2027
    %v2163 = vunpack.c.l.b16 %v2028
    %v2164 = vunpack.c.l.b16 %v2029
    %v2165 = vunpack.c.l.b16 %v2030
    %v2166 = vunpack.c.l.b16 %v2031
    %v2167 = vunpack.c.l.b16 %v2032
    %v2168 = vunpack.c.l.b16 %v2033
    %v2169 = vunpack.c.l.b16 %v2034
    %v2170 = vunpack.c.l.b16 %v2035
    %v2171 = vunpack.c.l.b16 %v2036
    %v2172 = vunpack.c.l.b16 %v2037
    %v2173 = vunpack.c.l.b16 %v2038
    %v2174 = vunpack.c.l.b16 %v2039
    %v2175 = vunpack.c.l.b16 %v2040
    %v2176 = vunpack.c.l.b16 %v2041
    %v2177 = vunpack.c.l.b16 %v2042
    %v2178 = vunpack.c.l.b16 %v2043
    %v2179 = vunpack.c.l.b16 %v2044
    %v2180 = vunpack.c.l.b16 %v2045
    %v2181 = vunpack.c.l.b16 %v2046
    %v2182 = vunpack.c.l.b16 %v2047
    %v2183 = vunpack.c.l.b16 %v2048
    %v2184 = vpack.c.b16 %v2121, %v2120
    %v2185 = vpack.c.b16 %v2123, %v2122
    %v2186 = vpack.c.b16 %v2125, %v2124
    %v2187 = vpack.c.b16 %v2127, %v2126
    %v2188 = vpack.c.b16 %v2129, %v2128
    %v2189 = vpack.c.b16 %v2131, %v2130
    %v2190 = vpack.c.b16 %v2133, %v2132
    %v2191 = vpack.c.b16 %v2135, %v2134
    %v2192 = vpack.c.b16 %v2137, %v2136
    %v2193 = vpack.c.b16 %v2139, %v2138
    %v2194 = vpack.c.b16 %v2141, %v2140
    %v2195 = vpack.c.b16 %v2143, %v2142
    %v2196 = vpack.c.b16 %v2145, %v2144
    %v2197 = vpack.c.b16 %v2147, %v2146
    %v2198 = vpack.c.b16 %v2149, %v2148
    %v2199 = vpack.c.b16 %v2151, %v2150
    %v2200 = vpack.c.b16 %v2153, %v2152
    %v2201 = vpack.c.b16 %v2155, %v2154
    %v2202 = vpack.c.b16 %v2157, %v2156
    %v2203 = vpack.c.b16 %v2159, %v2158
    %v2204 = vpack.c.b16 %v2161, %v2160
    %v2205 = vpack.c.b16 %v2163, %v2162
    %v2206 = vpack.c.b16 %v2165, %v2164
    %v2207 = vpack.c.b16 %v2167, %v2166
    %v2208 = vpack.c.b16 %v2169, %v2168
    %v2209 = vpack.c.b16 %v2171, %v2170
    %v2210 = vpack.c.b16 %v2173, %v2172
    %v2211 = vpack.c.b16 %v2175, %v2174
    %v2212 = vpack.c.b16 %v2177, %v2176
    %v2213 = vpack.c.b16 %v2179, %v2178
    %v2214 = vpack.c.b16 %v2181, %v2180
    %v2215 = vpack.c.b16 %v2183, %v2182
    %2248 = vmatprep.subr.bf16.mxu0 0
    %2249 = vmatpush1.bf16.msra.mxu0 %v2191
    %2250 = vmatprep.subr.bf16.mxu0 0
    %2251 = vmatpush1.bf16.msra.mxu0 %v2190
    %2252 = vmatprep.subr.bf16.mxu0 0
    %2253 = vmatpush1.bf16.msra.mxu0 %v2189
    %2254 = vmatprep.subr.bf16.mxu0 0
    %2255 = vmatpush1.bf16.msra.mxu0 %v2188
    %2256 = vmatprep.subr.bf16.mxu0 0
    %2257 = vmatpush1.bf16.msra.mxu0 %v2187
    %2258 = vmatprep.subr.bf16.mxu0 0
    %2259 = vmatpush1.bf16.msra.mxu0 %v2186
    %2260 = vmatprep.subr.bf16.mxu0 0
    %2261 = vmatpush1.bf16.msra.mxu0 %v2185
    %2262 = vmatprep.subr.bf16.mxu0 0
    %2263 = vmatpush1.bf16.msra.mxu0 %v2184
    %2264 = vmatprep.subr.bf16.mxu0 0
    %2265 = vmatpush2.bf16.msra.mxu0 %v2199
    %2266 = vmatprep.subr.bf16.mxu0 0
    %2267 = vmatpush2.bf16.msra.mxu0 %v2198
    %2268 = vmatprep.subr.bf16.mxu0 0
    %2269 = vmatpush2.bf16.msra.mxu0 %v2197
    %2270 = vmatprep.subr.bf16.mxu0 0
    %2271 = vmatpush2.bf16.msra.mxu0 %v2196
    %2272 = vmatprep.subr.bf16.mxu0 0
    %2273 = vmatpush2.bf16.msra.mxu0 %v2195
    %2274 = vmatprep.subr.bf16.mxu0 0
    %2275 = vmatpush2.bf16.msra.mxu0 %v2194
    %2276 = vmatprep.subr.bf16.mxu0 0
    %2277 = vmatpush2.bf16.msra.mxu0 %v2193
    %2278 = vmatprep.subr.bf16.mxu0 0
    %2279 = vmatpush2.bf16.msra.mxu0 %v2192
    %2280 = vmatprep.mubr.bf16.mxu0 %v1978
    %2281 = vmatmul.mubr.bf16.gmra.mxu0 %v1977
    %v2282 = vpop.f32.mrf.mxu0
    %v2283 = vadd.f32 %v2054, %v2282
    %v2284 = vpop.f32.mrf.mxu0
    %v2285 = vpop.f32.mrf.mxu0
    %v2286 = vadd.f32 %v2054, %v2285
    %v2287 = vpop.f32.mrf.mxu0
    %2288 = vmatprep.mubr.bf16.mxu0 %v1982
    %2289 = vmatmul.mubr.bf16.gmra.mxu0 %v1981
    %v2290 = vpop.f32.mrf.mxu0
    %v2291 = vadd.f32 %v2054, %v2290
    %v2292 = vpop.f32.mrf.mxu0
    %v2293 = vpop.f32.mrf.mxu0
    %v2294 = vadd.f32 %v2054, %v2293
    %v2295 = vpop.f32.mrf.mxu0
    %2296 = vdwg.mxu0
    %2297 = vmatprep.subr.bf16.mxu0 0
    %2298 = vmatpush1.bf16.msra.mxu0 %v2207
    %2299 = vmatprep.subr.bf16.mxu0 0
    %2300 = vmatpush1.bf16.msra.mxu0 %v2206
    %2301 = vmatprep.subr.bf16.mxu0 0
    %2302 = vmatpush1.bf16.msra.mxu0 %v2205
    %2303 = vmatprep.subr.bf16.mxu0 0
    %2304 = vmatpush1.bf16.msra.mxu0 %v2204
    %2305 = vmatprep.subr.bf16.mxu0 0
    %2306 = vmatpush1.bf16.msra.mxu0 %v2203
    %2307 = vmatprep.subr.bf16.mxu0 0
    %2308 = vmatpush1.bf16.msra.mxu0 %v2202
    %2309 = vmatprep.subr.bf16.mxu0 0
    %2310 = vmatpush1.bf16.msra.mxu0 %v2201
    %2311 = vmatprep.subr.bf16.mxu0 0
    %2312 = vmatpush1.bf16.msra.mxu0 %v2200
    %2313 = vmatprep.subr.bf16.mxu0 0
    %2314 = vmatpush2.bf16.msra.mxu0 %v2215
    %2315 = vmatprep.subr.bf16.mxu0 0
    %2316 = vmatpush2.bf16.msra.mxu0 %v2214
    %2317 = vmatprep.subr.bf16.mxu0 0
    %2318 = vmatpush2.bf16.msra.mxu0 %v2213
    %2319 = vmatprep.subr.bf16.mxu0 0
    %2320 = vmatpush2.bf16.msra.mxu0 %v2212
    %2321 = vmatprep.subr.bf16.mxu0 0
    %2322 = vmatpush2.bf16.msra.mxu0 %v2211
    %2323 = vmatprep.subr.bf16.mxu0 0
    %2324 = vmatpush2.bf16.msra.mxu0 %v2210
    %2325 = vmatprep.subr.bf16.mxu0 0
    %2326 = vmatpush2.bf16.msra.mxu0 %v2209
    %2327 = vmatprep.subr.bf16.mxu0 0
    %2328 = vmatpush2.bf16.msra.mxu0 %v2208
    %2329 = vmatprep.mubr.bf16.mxu0 %v1980
    %2330 = vmatmul.mubr.bf16.gmra.mxu0 %v1979
    %v2331 = vpop.f32.mrf.mxu0
    %v2332 = vadd.f32 %v2283, %v2331
    %v2333 = vpop.f32.mrf.mxu0
    %v2334 = vpop.f32.mrf.mxu0
    %v2335 = vadd.f32 %v2286, %v2334
    %v2336 = vpop.f32.mrf.mxu0
    %2337 = vmatprep.mubr.bf16.mxu0 %v1984
    %2338 = vmatmul.mubr.bf16.gmra.mxu0 %v1983
    %v2339 = vpop.f32.mrf.mxu0
    %v2340 = vadd.f32 %v2291, %v2339
    %v2341 = vpop.f32.mrf.mxu0
    %v2342 = vpop.f32.mrf.mxu0
    %v2343 = vadd.f32 %v2294, %v2342
    %v2344 = vpop.f32.mrf.mxu0
    %2345 = vdwg.mxu0
    %v2346 = vadd.f32 %v1580, %v2332
    %v2347 = vadd.f32 %v1581, %v2335
    %v2348 = vadd.f32 %v1582, %v2340
    %v2349 = vadd.f32 %v1583, %v2343
    %2350 = vst [vmem:[#allocation11] sm:$0xff] %v2346
    %2351 = vst [vmem:[#allocation11 + $0x8] sm:$0xff] %v2347
    %2352 = vst [vmem:[#allocation11 + $0x10] sm:$0xff] %v2348
    %2353 = vst [vmem:[#allocation11 + $0x18] sm:$0xff] %v2349
    // Predicated region
    $region58: #{transformer_block.1} parent=1 // pred_check
      _
    $region59: #{transformer_block.1} parent=1 // pred_check_branch
      %2355 = sbr.rel (0) target = $region61
    $region60: #{transformer_block.1} parent=1 // pred_region
      %s2357 = ssub.s32 512, 512
      %2358 = vsyncadd [#allocation4], %s2357
      %s2359 = sshll.u32 [#allocation11], 4
      %s2360 = int_to_ptr.vmem [resolvable:$true] %s2359
      %2365 = dma.vmem_to_hbm [thread:$0]  %s2360, 512, %s9, [#allocation4], 128, 128, 8
    $region61: #{transformer_block.1} parent=1 // pred_fallthru
      _
    // Predicated region
    $region62: #{transformer_block.1} parent=1 // pred_check
      _
    $region63: #{transformer_block.1} parent=1 // pred_check_branch
      %2367 = sbr.rel (0) target = $region65
    $region64: #{transformer_block.1} parent=1 // pred_region
      %2368 = dma.done [#allocation4], 512
    $region65: #{transformer_block.1} parent=1 // pred_fallthru
      _
    %2369 = vsyncpa [#allocation3], 1
    %2370 = vsyncpa [#allocation6], 1
    %2371 = vsyncpa [#allocation9], 1
    %2372 = vsyncpa [#allocation4], 1

</llo_original>
